<compile_context>
chip_gen: v7x
topology: tpu7x:2x2x1
jax: 0.10.0
libtpu: 0.0.40
codegen_flags: <defaults>
</compile_context>

<pallas_src>
import jax
import jax.numpy as jnp
from jax.experimental import pallas as pl
from jax.experimental.pallas import tpu as pltpu

# ---- model config (module __init__) ----------------------------------------
IN_C, IN_H, IN_W = 4, 16, 16
BATCH = 2
IN_FEATURES = IN_C * IN_H * IN_W        # 1024
HIDDEN = 32
OUT_FEATURES = 16
BETA1 = 0.9
BETA2_INIT = 0.9                        # learn_beta=True -> runtime parameter
NUM_STEPS = 10
THRESHOLD = 1.0


def _snn_kernel(beta2_ref, x_ref, w1t_ref, w2t_ref, out_ref):
    """Whole SNN time loop in one grid-less invocation; all state in vregs."""
    x = x_ref[...]                       # [B, In]  f32
    w1t = w1t_ref[...]                   # [In, H]  f32
    w2t = w2t_ref[...]                   # [H, O]   f32

    B = x.shape[0]
    H = w1t.shape[1]
    O = w2t.shape[1]
    thr = jnp.float32(THRESHOLD)

    # snntorch clamps the (learned) beta to [0, 1] at use time.
    beta2 = jnp.clip(beta2_ref[0], 0.0, 1.0)
    # Hoisted splats (JAX does not CSE broadcast_in_dim inside the unrolled loop).
    beta1_b = jnp.full((B, H), BETA1, jnp.float32)
    beta2_b = jnp.full((B, O), beta2, jnp.float32)

    # Layer-1 input current is identical every step -> single hoisted MXU matmul.
    cur1 = jnp.dot(x, w1t, preferred_element_type=jnp.float32)   # [B, H]
    cur1_m1 = cur1 - thr        # pre-subtracted threshold, off the carried chain

    # ---- Phase 1: layer-1 leaky recurrence (pure VPU, fully unrolled). ------
    # Carried state: mem1 (f32) and the previous spike as a boolean mask.
    # Carried chain per step: {mul || where} -> add -> cmp  (~3 dependent ops).
    mem1 = jnp.zeros((B, H), jnp.float32)
    spk1_mask = jnp.zeros((B, H), jnp.bool_)
    spk1_f32 = []
    for _ in range(NUM_STEPS):
        mem1 = beta1_b * mem1 + jnp.where(spk1_mask, cur1_m1, cur1)
        spk1_mask = mem1 > thr
        spk1_f32.append(spk1_mask.astype(jnp.float32))   # off-chain; MXU operand

    # ---- Phase 2: every step's cur2 as values (no VMEM scratch). ------------
    # All ten matmuls depend only on phase-1 results + w2t, so none sit on the
    # layer-2 carried chain and they pipeline back-to-back on the MXU.
    cur2 = [jnp.dot(s, w2t, preferred_element_type=jnp.float32)  # [B, O] each
            for s in spk1_f32]
    cur2_m1 = [c - thr for c in cur2]     # one-time vectorized threshold subtract

    # ---- Phase 3: layer-2 leaky recurrence + mean accumulation (pure VPU). --
    mem2 = jnp.zeros((B, O), jnp.float32)
    spk2_mask = jnp.zeros((B, O), jnp.bool_)
    acc = jnp.zeros((B, O), jnp.float32)
    for t in range(NUM_STEPS):
        mem2 = beta2_b * mem2 + jnp.where(spk2_mask, cur2_m1[t], cur2[t])
        spk2_mask = mem2 > thr
        acc = acc + spk2_mask.astype(jnp.float32)   # separate 1-op accumulation chain

    # Output is [B, 16]: below one lane width -> masked store; accepted (single
    # vreg epilogue, not on the critical path).
    out_ref[...] = acc * jnp.float32(1.0 / NUM_STEPS)


@jax.jit
def normal_snn_forward(x_nchw, w1t, w2t, beta2):
    """x_nchw: [B,C,H,W] f32; w1t: [In, Hidden] = fc1.weight.T (cached);
    w2t: [Hidden, Out] = fc2.weight.T (cached); beta2: scalar (learned)."""
    B = x_nchw.shape[0]
    x_flat = x_nchw.reshape(B, -1).astype(jnp.float32)        # glue: flatten(1)
    beta2_arr = jnp.reshape(beta2, (1,)).astype(jnp.float32)  # scalar -> SMEM

    return pl.pallas_call(
        _snn_kernel,
        out_shape=jax.ShapeDtypeStruct((B, OUT_FEATURES), jnp.float32),
        in_specs=[
            pl.BlockSpec(memory_space=pltpu.MemorySpace.SMEM),   # beta2 (scalar)
            pl.BlockSpec(memory_space=pltpu.MemorySpace.VMEM),   # x_flat
            pl.BlockSpec(memory_space=pltpu.MemorySpace.VMEM),   # W1^T
            pl.BlockSpec(memory_space=pltpu.MemorySpace.VMEM),   # W2^T
        ],
        out_specs=pl.BlockSpec(memory_space=pltpu.MemorySpace.VMEM),
    )(beta2_arr, x_flat, w1t, w2t)


def _reference_forward(x_nchw, w1, w2, beta2):
    """Pure-JAX reference replicating snntorch Leaky semantics step by step.
    Matmul precision pinned to HIGHEST so the f32 contraction matches the
    Mosaic MXU lowering as closely as possible."""
    prec = jax.lax.Precision.HIGHEST
    x = x_nchw.reshape(x_nchw.shape[0], -1).astype(jnp.float32)
    cur1 = jnp.dot(x, w1.T, precision=prec)
    mem1 = jnp.zeros((x.shape[0], HIDDEN), jnp.float32)
    mem2 = jnp.zeros((x.shape[0], OUT_FEATURES), jnp.float32)
    acc = jnp.zeros_like(mem2)
    b2 = jnp.clip(beta2, 0.0, 1.0)
    for _ in range(NUM_STEPS):
        reset1 = (mem1 > THRESHOLD).astype(jnp.float32)
        mem1 = BETA1 * mem1 + cur1 - reset1 * THRESHOLD
        spk1 = (mem1 > THRESHOLD).astype(jnp.float32)
        cur2 = jnp.dot(spk1, w2.T, precision=prec)
        reset2 = (mem2 > THRESHOLD).astype(jnp.float32)
        mem2 = b2 * mem2 + cur2 - reset2 * THRESHOLD
        spk2 = (mem2 > THRESHOLD).astype(jnp.float32)
        acc = acc + spk2
    return acc / NUM_STEPS


if __name__ == "__main__":
    key = jax.random.PRNGKey(0)
    kx, k1, k2 = jax.random.split(key, 3)

    # Deterministic parameter init mirroring nn.Linear (uniform +-1/sqrt(fan_in)).
    x = jax.random.normal(kx, (BATCH, IN_C, IN_H, IN_W), jnp.float32)
    bound1 = 1.0 / (IN_FEATURES ** 0.5)
    w1 = jax.random.uniform(k1, (HIDDEN, IN_FEATURES), jnp.float32,
                            minval=-bound1, maxval=bound1)
    bound2 = 1.0 / (HIDDEN ** 0.5)
    w2 = jax.random.uniform(k2, (OUT_FEATURES, HIDDEN), jnp.float32,
                            minval=-bound2, maxval=bound2)
    beta2 = jnp.float32(BETA2_INIT)

    # Cache the transposed weights ONCE (parameter prep), so the per-call
    # forward path does no weight transpose / extra HBM round-trip.
    w1t = jnp.transpose(w1)     # [In, Hidden]
    w2t = jnp.transpose(w2)     # [Hidden, Out]

    out = normal_snn_forward(x, w1t, w2t, beta2)
    out = jax.block_until_ready(out)

    ref = _reference_forward(x, w1, w2, beta2)
    assert out.shape == (BATCH, OUT_FEATURES)

    diff = jnp.abs(out - ref)
    ok = bool(jnp.allclose(out, ref, atol=1e-5))
    if not ok:
        # The Mosaic MXU f32 matmul and the XLA reference matmul need not be
        # bit-identical; a membrane value within float error of the threshold
        # can flip a spike, shifting outputs by exact multiples of 1/NUM_STEPS.
        # Accept only that (rare, quantized, small) case; reject anything else.
        q = diff * NUM_STEPS
        ok = (bool(jnp.all(jnp.abs(q - jnp.round(q)) <= 1e-3))
              and float(jnp.max(diff)) <= 2.0 / NUM_STEPS + 1e-3
              and float(jnp.mean((diff > 1e-5).astype(jnp.float32))) <= 0.25)
    assert ok, f"Pallas output mismatch vs reference: max|diff|={float(jnp.max(diff))}"

    print("KERNEL_OK")
</pallas_src>

<mosaic_0001>
module attributes {stable_mosaic.version = 11 : i64} {
  func.func @_snn_kernel(%arg0: memref<1xf32, #tpu.memory_space<smem>>, %arg1: memref<2x1024xf32, #tpu.memory_space<vmem>>, %arg2: memref<1024x32xf32, #tpu.memory_space<vmem>>, %arg3: memref<32x16xf32, #tpu.memory_space<vmem>>, %arg4: memref<2x16xf32, #tpu.memory_space<vmem>>) attributes {dimension_semantics = [], scalar_prefetch = 0 : i64, scratch_operands = 0 : i64, tpu.core_type = #tpu.core_type<tc>} {
    %c0 = arith.constant 0 : index
    %c0_0 = arith.constant 0 : index
    %0 = vector.load %arg1[%c0, %c0_0] : memref<2x1024xf32, #tpu.memory_space<vmem>>, vector<2x1024xf32>
    %c0_1 = arith.constant 0 : index
    %c0_2 = arith.constant 0 : index
    %1 = vector.load %arg2[%c0_1, %c0_2] : memref<1024x32xf32, #tpu.memory_space<vmem>>, vector<1024x32xf32>
    %c0_3 = arith.constant 0 : index
    %c0_4 = arith.constant 0 : index
    %2 = vector.load %arg3[%c0_3, %c0_4] : memref<32x16xf32, #tpu.memory_space<vmem>>, vector<32x16xf32>
    %c0_5 = arith.constant 0 : index
    %3 = memref.load %arg0[%c0_5] : memref<1xf32, #tpu.memory_space<smem>>
    %cst = arith.constant 0.000000e+00 : f32
    %cst_6 = arith.constant 1.000000e+00 : f32
    %4 = arith.maximumf %cst, %3 : f32
    %5 = arith.minimumf %cst_6, %4 : f32
    %cst_7 = arith.constant 0.899999976 : f32
    %6 = vector.broadcast %cst_7 : f32 to vector<2x32xf32>
    %7 = vector.broadcast %5 : f32 to vector<2x16xf32>
    %cst_8 = arith.constant dense<0.000000e+00> : vector<2x32xf32>
    %8 = tpu.matmul %0, %1, %cst_8 {dimension_numbers = #tpu.dot_dimension_numbers<[1], [0], [0], [1], [0, 0, 1, 1], [], []>} : vector<2x1024xf32>, vector<1024x32xf32>, vector<2x32xf32> -> vector<2x32xf32>
    %cst_9 = arith.constant 1.000000e+00 : f32
    %9 = vector.broadcast %cst_9 : f32 to vector<2x32xf32>
    %10 = arith.subf %8, %9 : vector<2x32xf32>
    %cst_10 = arith.constant 0.000000e+00 : f32
    %11 = vector.broadcast %cst_10 : f32 to vector<2x32xf32>
    %false = arith.constant false
    %12 = vector.broadcast %false : i1 to vector<2x32xi1>
    %13 = arith.mulf %6, %11 : vector<2x32xf32>
    %14 = arith.select %12, %10, %8 : vector<2x32xi1>, vector<2x32xf32>
    %15 = arith.addf %13, %14 : vector<2x32xf32>
    %cst_11 = arith.constant 1.000000e+00 : f32
    %16 = vector.broadcast %cst_11 : f32 to vector<2x32xf32>
    %17 = arith.cmpf ogt, %15, %16 : vector<2x32xf32>
    %18 = arith.extui %17 : vector<2x32xi1> to vector<2x32xi32>
    %19 = arith.sitofp %18 : vector<2x32xi32> to vector<2x32xf32>
    %20 = arith.mulf %6, %15 : vector<2x32xf32>
    %21 = arith.select %17, %10, %8 : vector<2x32xi1>, vector<2x32xf32>
    %22 = arith.addf %20, %21 : vector<2x32xf32>
    %cst_12 = arith.constant 1.000000e+00 : f32
    %23 = vector.broadcast %cst_12 : f32 to vector<2x32xf32>
    %24 = arith.cmpf ogt, %22, %23 : vector<2x32xf32>
    %25 = arith.extui %24 : vector<2x32xi1> to vector<2x32xi32>
    %26 = arith.sitofp %25 : vector<2x32xi32> to vector<2x32xf32>
    %27 = arith.mulf %6, %22 : vector<2x32xf32>
    %28 = arith.select %24, %10, %8 : vector<2x32xi1>, vector<2x32xf32>
    %29 = arith.addf %27, %28 : vector<2x32xf32>
    %cst_13 = arith.constant 1.000000e+00 : f32
    %30 = vector.broadcast %cst_13 : f32 to vector<2x32xf32>
    %31 = arith.cmpf ogt, %29, %30 : vector<2x32xf32>
    %32 = arith.extui %31 : vector<2x32xi1> to vector<2x32xi32>
    %33 = arith.sitofp %32 : vector<2x32xi32> to vector<2x32xf32>
    %34 = arith.mulf %6, %29 : vector<2x32xf32>
    %35 = arith.select %31, %10, %8 : vector<2x32xi1>, vector<2x32xf32>
    %36 = arith.addf %34, %35 : vector<2x32xf32>
    %cst_14 = arith.constant 1.000000e+00 : f32
    %37 = vector.broadcast %cst_14 : f32 to vector<2x32xf32>
    %38 = arith.cmpf ogt, %36, %37 : vector<2x32xf32>
    %39 = arith.extui %38 : vector<2x32xi1> to vector<2x32xi32>
    %40 = arith.sitofp %39 : vector<2x32xi32> to vector<2x32xf32>
    %41 = arith.mulf %6, %36 : vector<2x32xf32>
    %42 = arith.select %38, %10, %8 : vector<2x32xi1>, vector<2x32xf32>
    %43 = arith.addf %41, %42 : vector<2x32xf32>
    %cst_15 = arith.constant 1.000000e+00 : f32
    %44 = vector.broadcast %cst_15 : f32 to vector<2x32xf32>
    %45 = arith.cmpf ogt, %43, %44 : vector<2x32xf32>
    %46 = arith.extui %45 : vector<2x32xi1> to vector<2x32xi32>
    %47 = arith.sitofp %46 : vector<2x32xi32> to vector<2x32xf32>
    %48 = arith.mulf %6, %43 : vector<2x32xf32>
    %49 = arith.select %45, %10, %8 : vector<2x32xi1>, vector<2x32xf32>
    %50 = arith.addf %48, %49 : vector<2x32xf32>
    %cst_16 = arith.constant 1.000000e+00 : f32
    %51 = vector.broadcast %cst_16 : f32 to vector<2x32xf32>
    %52 = arith.cmpf ogt, %50, %51 : vector<2x32xf32>
    %53 = arith.extui %52 : vector<2x32xi1> to vector<2x32xi32>
    %54 = arith.sitofp %53 : vector<2x32xi32> to vector<2x32xf32>
    %55 = arith.mulf %6, %50 : vector<2x32xf32>
    %56 = arith.select %52, %10, %8 : vector<2x32xi1>, vector<2x32xf32>
    %57 = arith.addf %55, %56 : vector<2x32xf32>
    %cst_17 = arith.constant 1.000000e+00 : f32
    %58 = vector.broadcast %cst_17 : f32 to vector<2x32xf32>
    %59 = arith.cmpf ogt, %57, %58 : vector<2x32xf32>
    %60 = arith.extui %59 : vector<2x32xi1> to vector<2x32xi32>
    %61 = arith.sitofp %60 : vector<2x32xi32> to vector<2x32xf32>
    %62 = arith.mulf %6, %57 : vector<2x32xf32>
    %63 = arith.select %59, %10, %8 : vector<2x32xi1>, vector<2x32xf32>
    %64 = arith.addf %62, %63 : vector<2x32xf32>
    %cst_18 = arith.constant 1.000000e+00 : f32
    %65 = vector.broadcast %cst_18 : f32 to vector<2x32xf32>
    %66 = arith.cmpf ogt, %64, %65 : vector<2x32xf32>
    %67 = arith.extui %66 : vector<2x32xi1> to vector<2x32xi32>
    %68 = arith.sitofp %67 : vector<2x32xi32> to vector<2x32xf32>
    %69 = arith.mulf %6, %64 : vector<2x32xf32>
    %70 = arith.select %66, %10, %8 : vector<2x32xi1>, vector<2x32xf32>
    %71 = arith.addf %69, %70 : vector<2x32xf32>
    %cst_19 = arith.constant 1.000000e+00 : f32
    %72 = vector.broadcast %cst_19 : f32 to vector<2x32xf32>
    %73 = arith.cmpf ogt, %71, %72 : vector<2x32xf32>
    %74 = arith.extui %73 : vector<2x32xi1> to vector<2x32xi32>
    %75 = arith.sitofp %74 : vector<2x32xi32> to vector<2x32xf32>
    %76 = arith.mulf %6, %71 : vector<2x32xf32>
    %77 = arith.select %73, %10, %8 : vector<2x32xi1>, vector<2x32xf32>
    %78 = arith.addf %76, %77 : vector<2x32xf32>
    %cst_20 = arith.constant 1.000000e+00 : f32
    %79 = vector.broadcast %cst_20 : f32 to vector<2x32xf32>
    %80 = arith.cmpf ogt, %78, %79 : vector<2x32xf32>
    %81 = arith.extui %80 : vector<2x32xi1> to vector<2x32xi32>
    %82 = arith.sitofp %81 : vector<2x32xi32> to vector<2x32xf32>
    %cst_21 = arith.constant dense<0.000000e+00> : vector<2x16xf32>
    %83 = tpu.matmul %19, %2, %cst_21 {dimension_numbers = #tpu.dot_dimension_numbers<[1], [0], [0], [1], [0, 0, 1, 1], [], []>} : vector<2x32xf32>, vector<32x16xf32>, vector<2x16xf32> -> vector<2x16xf32>
    %cst_22 = arith.constant dense<0.000000e+00> : vector<2x16xf32>
    %84 = tpu.matmul %26, %2, %cst_22 {dimension_numbers = #tpu.dot_dimension_numbers<[1], [0], [0], [1], [0, 0, 1, 1], [], []>} : vector<2x32xf32>, vector<32x16xf32>, vector<2x16xf32> -> vector<2x16xf32>
    %cst_23 = arith.constant dense<0.000000e+00> : vector<2x16xf32>
    %85 = tpu.matmul %33, %2, %cst_23 {dimension_numbers = #tpu.dot_dimension_numbers<[1], [0], [0], [1], [0, 0, 1, 1], [], []>} : vector<2x32xf32>, vector<32x16xf32>, vector<2x16xf32> -> vector<2x16xf32>
    %cst_24 = arith.constant dense<0.000000e+00> : vector<2x16xf32>
    %86 = tpu.matmul %40, %2, %cst_24 {dimension_numbers = #tpu.dot_dimension_numbers<[1], [0], [0], [1], [0, 0, 1, 1], [], []>} : vector<2x32xf32>, vector<32x16xf32>, vector<2x16xf32> -> vector<2x16xf32>
    %cst_25 = arith.constant dense<0.000000e+00> : vector<2x16xf32>
    %87 = tpu.matmul %47, %2, %cst_25 {dimension_numbers = #tpu.dot_dimension_numbers<[1], [0], [0], [1], [0, 0, 1, 1], [], []>} : vector<2x32xf32>, vector<32x16xf32>, vector<2x16xf32> -> vector<2x16xf32>
    %cst_26 = arith.constant dense<0.000000e+00> : vector<2x16xf32>
    %88 = tpu.matmul %54, %2, %cst_26 {dimension_numbers = #tpu.dot_dimension_numbers<[1], [0], [0], [1], [0, 0, 1, 1], [], []>} : vector<2x32xf32>, vector<32x16xf32>, vector<2x16xf32> -> vector<2x16xf32>
    %cst_27 = arith.constant dense<0.000000e+00> : vector<2x16xf32>
    %89 = tpu.matmul %61, %2, %cst_27 {dimension_numbers = #tpu.dot_dimension_numbers<[1], [0], [0], [1], [0, 0, 1, 1], [], []>} : vector<2x32xf32>, vector<32x16xf32>, vector<2x16xf32> -> vector<2x16xf32>
    %cst_28 = arith.constant dense<0.000000e+00> : vector<2x16xf32>
    %90 = tpu.matmul %68, %2, %cst_28 {dimension_numbers = #tpu.dot_dimension_numbers<[1], [0], [0], [1], [0, 0, 1, 1], [], []>} : vector<2x32xf32>, vector<32x16xf32>, vector<2x16xf32> -> vector<2x16xf32>
    %cst_29 = arith.constant dense<0.000000e+00> : vector<2x16xf32>
    %91 = tpu.matmul %75, %2, %cst_29 {dimension_numbers = #tpu.dot_dimension_numbers<[1], [0], [0], [1], [0, 0, 1, 1], [], []>} : vector<2x32xf32>, vector<32x16xf32>, vector<2x16xf32> -> vector<2x16xf32>
    %cst_30 = arith.constant dense<0.000000e+00> : vector<2x16xf32>
    %92 = tpu.matmul %82, %2, %cst_30 {dimension_numbers = #tpu.dot_dimension_numbers<[1], [0], [0], [1], [0, 0, 1, 1], [], []>} : vector<2x32xf32>, vector<32x16xf32>, vector<2x16xf32> -> vector<2x16xf32>
    %cst_31 = arith.constant 1.000000e+00 : f32
    %93 = vector.broadcast %cst_31 : f32 to vector<2x16xf32>
    %94 = arith.subf %83, %93 : vector<2x16xf32>
    %cst_32 = arith.constant 1.000000e+00 : f32
    %95 = vector.broadcast %cst_32 : f32 to vector<2x16xf32>
    %96 = arith.subf %84, %95 : vector<2x16xf32>
    %cst_33 = arith.constant 1.000000e+00 : f32
    %97 = vector.broadcast %cst_33 : f32 to vector<2x16xf32>
    %98 = arith.subf %85, %97 : vector<2x16xf32>
    %cst_34 = arith.constant 1.000000e+00 : f32
    %99 = vector.broadcast %cst_34 : f32 to vector<2x16xf32>
    %100 = arith.subf %86, %99 : vector<2x16xf32>
    %cst_35 = arith.constant 1.000000e+00 : f32
    %101 = vector.broadcast %cst_35 : f32 to vector<2x16xf32>
    %102 = arith.subf %87, %101 : vector<2x16xf32>
    %cst_36 = arith.constant 1.000000e+00 : f32
    %103 = vector.broadcast %cst_36 : f32 to vector<2x16xf32>
    %104 = arith.subf %88, %103 : vector<2x16xf32>
    %cst_37 = arith.constant 1.000000e+00 : f32
    %105 = vector.broadcast %cst_37 : f32 to vector<2x16xf32>
    %106 = arith.subf %89, %105 : vector<2x16xf32>
    %cst_38 = arith.constant 1.000000e+00 : f32
    %107 = vector.broadcast %cst_38 : f32 to vector<2x16xf32>
    %108 = arith.subf %90, %107 : vector<2x16xf32>
    %cst_39 = arith.constant 1.000000e+00 : f32
    %109 = vector.broadcast %cst_39 : f32 to vector<2x16xf32>
    %110 = arith.subf %91, %109 : vector<2x16xf32>
    %cst_40 = arith.constant 1.000000e+00 : f32
    %111 = vector.broadcast %cst_40 : f32 to vector<2x16xf32>
    %112 = arith.subf %92, %111 : vector<2x16xf32>
    %cst_41 = arith.constant 0.000000e+00 : f32
    %113 = vector.broadcast %cst_41 : f32 to vector<2x16xf32>
    %false_42 = arith.constant false
    %114 = vector.broadcast %false_42 : i1 to vector<2x16xi1>
    %cst_43 = arith.constant 0.000000e+00 : f32
    %115 = vector.broadcast %cst_43 : f32 to vector<2x16xf32>
    %116 = arith.mulf %7, %113 : vector<2x16xf32>
    %117 = arith.select %114, %94, %83 : vector<2x16xi1>, vector<2x16xf32>
    %118 = arith.addf %116, %117 : vector<2x16xf32>
    %cst_44 = arith.constant 1.000000e+00 : f32
    %119 = vector.broadcast %cst_44 : f32 to vector<2x16xf32>
    %120 = arith.cmpf ogt, %118, %119 : vector<2x16xf32>
    %121 = arith.extui %120 : vector<2x16xi1> to vector<2x16xi32>
    %122 = arith.sitofp %121 : vector<2x16xi32> to vector<2x16xf32>
    %123 = arith.addf %115, %122 : vector<2x16xf32>
    %124 = arith.mulf %7, %118 : vector<2x16xf32>
    %125 = arith.select %120, %96, %84 : vector<2x16xi1>, vector<2x16xf32>
    %126 = arith.addf %124, %125 : vector<2x16xf32>
    %cst_45 = arith.constant 1.000000e+00 : f32
    %127 = vector.broadcast %cst_45 : f32 to vector<2x16xf32>
    %128 = arith.cmpf ogt, %126, %127 : vector<2x16xf32>
    %129 = arith.extui %128 : vector<2x16xi1> to vector<2x16xi32>
    %130 = arith.sitofp %129 : vector<2x16xi32> to vector<2x16xf32>
    %131 = arith.addf %123, %130 : vector<2x16xf32>
    %132 = arith.mulf %7, %126 : vector<2x16xf32>
    %133 = arith.select %128, %98, %85 : vector<2x16xi1>, vector<2x16xf32>
    %134 = arith.addf %132, %133 : vector<2x16xf32>
    %cst_46 = arith.constant 1.000000e+00 : f32
    %135 = vector.broadcast %cst_46 : f32 to vector<2x16xf32>
    %136 = arith.cmpf ogt, %134, %135 : vector<2x16xf32>
    %137 = arith.extui %136 : vector<2x16xi1> to vector<2x16xi32>
    %138 = arith.sitofp %137 : vector<2x16xi32> to vector<2x16xf32>
    %139 = arith.addf %131, %138 : vector<2x16xf32>
    %140 = arith.mulf %7, %134 : vector<2x16xf32>
    %141 = arith.select %136, %100, %86 : vector<2x16xi1>, vector<2x16xf32>
    %142 = arith.addf %140, %141 : vector<2x16xf32>
    %cst_47 = arith.constant 1.000000e+00 : f32
    %143 = vector.broadcast %cst_47 : f32 to vector<2x16xf32>
    %144 = arith.cmpf ogt, %142, %143 : vector<2x16xf32>
    %145 = arith.extui %144 : vector<2x16xi1> to vector<2x16xi32>
    %146 = arith.sitofp %145 : vector<2x16xi32> to vector<2x16xf32>
    %147 = arith.addf %139, %146 : vector<2x16xf32>
    %148 = arith.mulf %7, %142 : vector<2x16xf32>
    %149 = arith.select %144, %102, %87 : vector<2x16xi1>, vector<2x16xf32>
    %150 = arith.addf %148, %149 : vector<2x16xf32>
    %cst_48 = arith.constant 1.000000e+00 : f32
    %151 = vector.broadcast %cst_48 : f32 to vector<2x16xf32>
    %152 = arith.cmpf ogt, %150, %151 : vector<2x16xf32>
    %153 = arith.extui %152 : vector<2x16xi1> to vector<2x16xi32>
    %154 = arith.sitofp %153 : vector<2x16xi32> to vector<2x16xf32>
    %155 = arith.addf %147, %154 : vector<2x16xf32>
    %156 = arith.mulf %7, %150 : vector<2x16xf32>
    %157 = arith.select %152, %104, %88 : vector<2x16xi1>, vector<2x16xf32>
    %158 = arith.addf %156, %157 : vector<2x16xf32>
    %cst_49 = arith.constant 1.000000e+00 : f32
    %159 = vector.broadcast %cst_49 : f32 to vector<2x16xf32>
    %160 = arith.cmpf ogt, %158, %159 : vector<2x16xf32>
    %161 = arith.extui %160 : vector<2x16xi1> to vector<2x16xi32>
    %162 = arith.sitofp %161 : vector<2x16xi32> to vector<2x16xf32>
    %163 = arith.addf %155, %162 : vector<2x16xf32>
    %164 = arith.mulf %7, %158 : vector<2x16xf32>
    %165 = arith.select %160, %106, %89 : vector<2x16xi1>, vector<2x16xf32>
    %166 = arith.addf %164, %165 : vector<2x16xf32>
    %cst_50 = arith.constant 1.000000e+00 : f32
    %167 = vector.broadcast %cst_50 : f32 to vector<2x16xf32>
    %168 = arith.cmpf ogt, %166, %167 : vector<2x16xf32>
    %169 = arith.extui %168 : vector<2x16xi1> to vector<2x16xi32>
    %170 = arith.sitofp %169 : vector<2x16xi32> to vector<2x16xf32>
    %171 = arith.addf %163, %170 : vector<2x16xf32>
    %172 = arith.mulf %7, %166 : vector<2x16xf32>
    %173 = arith.select %168, %108, %90 : vector<2x16xi1>, vector<2x16xf32>
    %174 = arith.addf %172, %173 : vector<2x16xf32>
    %cst_51 = arith.constant 1.000000e+00 : f32
    %175 = vector.broadcast %cst_51 : f32 to vector<2x16xf32>
    %176 = arith.cmpf ogt, %174, %175 : vector<2x16xf32>
    %177 = arith.extui %176 : vector<2x16xi1> to vector<2x16xi32>
    %178 = arith.sitofp %177 : vector<2x16xi32> to vector<2x16xf32>
    %179 = arith.addf %171, %178 : vector<2x16xf32>
    %180 = arith.mulf %7, %174 : vector<2x16xf32>
    %181 = arith.select %176, %110, %91 : vector<2x16xi1>, vector<2x16xf32>
    %182 = arith.addf %180, %181 : vector<2x16xf32>
    %cst_52 = arith.constant 1.000000e+00 : f32
    %183 = vector.broadcast %cst_52 : f32 to vector<2x16xf32>
    %184 = arith.cmpf ogt, %182, %183 : vector<2x16xf32>
    %185 = arith.extui %184 : vector<2x16xi1> to vector<2x16xi32>
    %186 = arith.sitofp %185 : vector<2x16xi32> to vector<2x16xf32>
    %187 = arith.addf %179, %186 : vector<2x16xf32>
    %188 = arith.mulf %7, %182 : vector<2x16xf32>
    %189 = arith.select %184, %112, %92 : vector<2x16xi1>, vector<2x16xf32>
    %190 = arith.addf %188, %189 : vector<2x16xf32>
    %cst_53 = arith.constant 1.000000e+00 : f32
    %191 = vector.broadcast %cst_53 : f32 to vector<2x16xf32>
    %192 = arith.cmpf ogt, %190, %191 : vector<2x16xf32>
    %193 = arith.extui %192 : vector<2x16xi1> to vector<2x16xi32>
    %194 = arith.sitofp %193 : vector<2x16xi32> to vector<2x16xf32>
    %195 = arith.addf %187, %194 : vector<2x16xf32>
    %cst_54 = arith.constant 1.000000e-01 : f32
    %196 = vector.broadcast %cst_54 : f32 to vector<2x16xf32>
    %197 = arith.mulf %195, %196 : vector<2x16xf32>
    %c0_55 = arith.constant 0 : index
    %c0_56 = arith.constant 0 : index
    %198 = vector.load %arg4[%c0_55, %c0_56] : memref<2x16xf32, #tpu.memory_space<vmem>>, vector<2x16xf32>
    tpu.vector_store %arg4[%c0_55, %c0_56], %197 {strides = array<i32>} : memref<2x16xf32, #tpu.memory_space<vmem>>, vector<2x16xf32>,
    return
  }
}

</mosaic_0001>

<llo_original>
// kernel: normal_snn_forward.1
$region0: #{normal_snn_forward.1}
  #allocation0 [shape = 'u32[]', space=smem, size = 0x4, offset = 0x4, fixed_abs, tag = 'smem constant byte address 0x4 - core index']
  #allocation1 [shape = 'u32[144,128]{1,0:T(1,128)}', space=vmem, size = 0x12000, scoped, tag = 'internal scratch']
  #allocation2 [shape = 'f32[1]{0:T(128)S(6)}', space=smem, size = 0x200, scoped, tag = 'scoped memory for normal_snn_forward.1']
  %s0 = inlined_call_operand.<no memory space> [shape: f32[1], index: 0, kind: input, shape index: {}]
  %s1 = inlined_call_operand.vmem [shape: f32[2,1024], index: 1, kind: input, shape index: {}]
  %s2 = inlined_call_operand.vmem [shape: f32[1024,32], index: 2, kind: input, shape index: {}]
  %s3 = inlined_call_operand.vmem [shape: f32[32,16], index: 3, kind: input, shape index: {}]
  %s4 = inlined_call_operand.hbm [shape: f32[2,16], index: 4, kind: output, shape index: {}]
  %s5 = sld [smem:[#allocation0]]
  $region26: #{normal_snn_forward.1} parent=0
    _
  %s7 = ssub.s32 1, %s5
  %s8 = scalar_select 0, %s7, %s5
  %9 = sst [smem:[#allocation2]] %s0
  $region1: #{normal_snn_forward.1} parent=0
    #allocation3 [shape = 'u8[1024]{0}', space=vmem, size = 0x400, scoped, tag = 'output window, operand 0, single buffered']
    #allocation4 [shape = 's32[1]{0}', space=sflag, size = 0x4, scoped, tag = 'scoped memory for normal_snn_forward.1']
    %10 = vsyncpa [#allocation4], 0
    // Predicated region
    $region2: #{normal_snn_forward.1} parent=1 // pred_check
      _
    $region3: #{normal_snn_forward.1} parent=1 // pred_check_branch
      %12 = sbr.rel (0) target = $region5
    $region4: #{normal_snn_forward.1} parent=1 // pred_region
      _
    $region5: #{normal_snn_forward.1} parent=1 // pred_fallthru
      _
    // Predicated region
    $region6: #{normal_snn_forward.1} parent=1 // pred_check
      _
    $region7: #{normal_snn_forward.1} parent=1 // pred_check_branch
      %14 = sbr.rel (0) target = $region9
    $region8: #{normal_snn_forward.1} parent=1 // pred_region
      _
    $region9: #{normal_snn_forward.1} parent=1 // pred_fallthru
      _
    // Predicated region
    $region10: #{normal_snn_forward.1} parent=1 // pred_check
      _
    $region11: #{normal_snn_forward.1} parent=1 // pred_check_branch
      %16 = sbr.rel (0) target = $region13
    $region12: #{normal_snn_forward.1} parent=1 // pred_region
      _
    $region13: #{normal_snn_forward.1} parent=1 // pred_fallthru
      _
    // Predicated region
    $region14: #{normal_snn_forward.1} parent=1 // pred_check
      _
    $region15: #{normal_snn_forward.1} parent=1 // pred_check_branch
      %18 = sbr.rel (0) target = $region17
    $region16: #{normal_snn_forward.1} parent=1 // pred_region
      _
    $region17: #{normal_snn_forward.1} parent=1 // pred_fallthru
      _
    %v19 = vld [vmem:[%s1] sm:$0xff]
    %v20 = vld [vmem:[%s1 + $0x8] sm:$0xff]
    %v21 = vld [vmem:[%s2] sm:$0xff]
    %v22 = vld [vmem:[%s2 + $0x8] sm:$0xff]
    %v23 = vld [vmem:[%s2 + $0x10] sm:$0xff]
    %v24 = vld [vmem:[%s2 + $0x18] sm:$0xff]
    %v25 = vld [vmem:[%s2 + $0x20] sm:$0xff]
    %v26 = vld [vmem:[%s2 + $0x28] sm:$0xff]
    %v27 = vld [vmem:[%s2 + $0x30] sm:$0xff]
    %v28 = vld [vmem:[%s2 + $0x38] sm:$0xff]
    %v29 = vld [vmem:[%s2 + $0x40] sm:$0xff]
    %v30 = vld [vmem:[%s2 + $0x48] sm:$0xff]
    %v31 = vld [vmem:[%s2 + $0x50] sm:$0xff]
    %v32 = vld [vmem:[%s2 + $0x58] sm:$0xff]
    %v33 = vld [vmem:[%s2 + $0x60] sm:$0xff]
    %v34 = vld [vmem:[%s2 + $0x68] sm:$0xff]
    %v35 = vld [vmem:[%s2 + $0x70] sm:$0xff]
    %v36 = vld [vmem:[%s2 + $0x78] sm:$0xff]
    %v37 = vld [vmem:[%s2 + $0x80] sm:$0xff]
    %v38 = vld [vmem:[%s2 + $0x88] sm:$0xff]
    %v39 = vld [vmem:[%s2 + $0x90] sm:$0xff]
    %v40 = vld [vmem:[%s2 + $0x98] sm:$0xff]
    %v41 = vld [vmem:[%s2 + $0xa0] sm:$0xff]
    %v42 = vld [vmem:[%s2 + $0xa8] sm:$0xff]
    %v43 = vld [vmem:[%s2 + $0xb0] sm:$0xff]
    %v44 = vld [vmem:[%s2 + $0xb8] sm:$0xff]
    %v45 = vld [vmem:[%s2 + $0xc0] sm:$0xff]
    %v46 = vld [vmem:[%s2 + $0xc8] sm:$0xff]
    %v47 = vld [vmem:[%s2 + $0xd0] sm:$0xff]
    %v48 = vld [vmem:[%s2 + $0xd8] sm:$0xff]
    %v49 = vld [vmem:[%s2 + $0xe0] sm:$0xff]
    %v50 = vld [vmem:[%s2 + $0xe8] sm:$0xff]
    %v51 = vld [vmem:[%s2 + $0xf0] sm:$0xff]
    %v52 = vld [vmem:[%s2 + $0xf8] sm:$0xff]
    %v53 = vld [vmem:[%s2 + $0x100] sm:$0xff]
    %v54 = vld [vmem:[%s2 + $0x108] sm:$0xff]
    %v55 = vld [vmem:[%s2 + $0x110] sm:$0xff]
    %v56 = vld [vmem:[%s2 + $0x118] sm:$0xff]
    %v57 = vld [vmem:[%s2 + $0x120] sm:$0xff]
    %v58 = vld [vmem:[%s2 + $0x128] sm:$0xff]
    %v59 = vld [vmem:[%s2 + $0x130] sm:$0xff]
    %v60 = vld [vmem:[%s2 + $0x138] sm:$0xff]
    %v61 = vld [vmem:[%s2 + $0x140] sm:$0xff]
    %v62 = vld [vmem:[%s2 + $0x148] sm:$0xff]
    %v63 = vld [vmem:[%s2 + $0x150] sm:$0xff]
    %v64 = vld [vmem:[%s2 + $0x158] sm:$0xff]
    %v65 = vld [vmem:[%s2 + $0x160] sm:$0xff]
    %v66 = vld [vmem:[%s2 + $0x168] sm:$0xff]
    %v67 = vld [vmem:[%s2 + $0x170] sm:$0xff]
    %v68 = vld [vmem:[%s2 + $0x178] sm:$0xff]
    %v69 = vld [vmem:[%s2 + $0x180] sm:$0xff]
    %v70 = vld [vmem:[%s2 + $0x188] sm:$0xff]
    %v71 = vld [vmem:[%s2 + $0x190] sm:$0xff]
    %v72 = vld [vmem:[%s2 + $0x198] sm:$0xff]
    %v73 = vld [vmem:[%s2 + $0x1a0] sm:$0xff]
    %v74 = vld [vmem:[%s2 + $0x1a8] sm:$0xff]
    %v75 = vld [vmem:[%s2 + $0x1b0] sm:$0xff]
    %v76 = vld [vmem:[%s2 + $0x1b8] sm:$0xff]
    %v77 = vld [vmem:[%s2 + $0x1c0] sm:$0xff]
    %v78 = vld [vmem:[%s2 + $0x1c8] sm:$0xff]
    %v79 = vld [vmem:[%s2 + $0x1d0] sm:$0xff]
    %v80 = vld [vmem:[%s2 + $0x1d8] sm:$0xff]
    %v81 = vld [vmem:[%s2 + $0x1e0] sm:$0xff]
    %v82 = vld [vmem:[%s2 + $0x1e8] sm:$0xff]
    %v83 = vld [vmem:[%s2 + $0x1f0] sm:$0xff]
    %v84 = vld [vmem:[%s2 + $0x1f8] sm:$0xff]
    %v85 = vld [vmem:[%s2 + $0x200] sm:$0xff]
    %v86 = vld [vmem:[%s2 + $0x208] sm:$0xff]
    %v87 = vld [vmem:[%s2 + $0x210] sm:$0xff]
    %v88 = vld [vmem:[%s2 + $0x218] sm:$0xff]
    %v89 = vld [vmem:[%s2 + $0x220] sm:$0xff]
    %v90 = vld [vmem:[%s2 + $0x228] sm:$0xff]
    %v91 = vld [vmem:[%s2 + $0x230] sm:$0xff]
    %v92 = vld [vmem:[%s2 + $0x238] sm:$0xff]
    %v93 = vld [vmem:[%s2 + $0x240] sm:$0xff]
    %v94 = vld [vmem:[%s2 + $0x248] sm:$0xff]
    %v95 = vld [vmem:[%s2 + $0x250] sm:$0xff]
    %v96 = vld [vmem:[%s2 + $0x258] sm:$0xff]
    %v97 = vld [vmem:[%s2 + $0x260] sm:$0xff]
    %v98 = vld [vmem:[%s2 + $0x268] sm:$0xff]
    %v99 = vld [vmem:[%s2 + $0x270] sm:$0xff]
    %v100 = vld [vmem:[%s2 + $0x278] sm:$0xff]
    %v101 = vld [vmem:[%s2 + $0x280] sm:$0xff]
    %v102 = vld [vmem:[%s2 + $0x288] sm:$0xff]
    %v103 = vld [vmem:[%s2 + $0x290] sm:$0xff]
    %v104 = vld [vmem:[%s2 + $0x298] sm:$0xff]
    %v105 = vld [vmem:[%s2 + $0x2a0] sm:$0xff]
    %v106 = vld [vmem:[%s2 + $0x2a8] sm:$0xff]
    %v107 = vld [vmem:[%s2 + $0x2b0] sm:$0xff]
    %v108 = vld [vmem:[%s2 + $0x2b8] sm:$0xff]
    %v109 = vld [vmem:[%s2 + $0x2c0] sm:$0xff]
    %v110 = vld [vmem:[%s2 + $0x2c8] sm:$0xff]
    %v111 = vld [vmem:[%s2 + $0x2d0] sm:$0xff]
    %v112 = vld [vmem:[%s2 + $0x2d8] sm:$0xff]
    %v113 = vld [vmem:[%s2 + $0x2e0] sm:$0xff]
    %v114 = vld [vmem:[%s2 + $0x2e8] sm:$0xff]
    %v115 = vld [vmem:[%s2 + $0x2f0] sm:$0xff]
    %v116 = vld [vmem:[%s2 + $0x2f8] sm:$0xff]
    %v117 = vld [vmem:[%s2 + $0x300] sm:$0xff]
    %v118 = vld [vmem:[%s2 + $0x308] sm:$0xff]
    %v119 = vld [vmem:[%s2 + $0x310] sm:$0xff]
    %v120 = vld [vmem:[%s2 + $0x318] sm:$0xff]
    %v121 = vld [vmem:[%s2 + $0x320] sm:$0xff]
    %v122 = vld [vmem:[%s2 + $0x328] sm:$0xff]
    %v123 = vld [vmem:[%s2 + $0x330] sm:$0xff]
    %v124 = vld [vmem:[%s2 + $0x338] sm:$0xff]
    %v125 = vld [vmem:[%s2 + $0x340] sm:$0xff]
    %v126 = vld [vmem:[%s2 + $0x348] sm:$0xff]
    %v127 = vld [vmem:[%s2 + $0x350] sm:$0xff]
    %v128 = vld [vmem:[%s2 + $0x358] sm:$0xff]
    %v129 = vld [vmem:[%s2 + $0x360] sm:$0xff]
    %v130 = vld [vmem:[%s2 + $0x368] sm:$0xff]
    %v131 = vld [vmem:[%s2 + $0x370] sm:$0xff]
    %v132 = vld [vmem:[%s2 + $0x378] sm:$0xff]
    %v133 = vld [vmem:[%s2 + $0x380] sm:$0xff]
    %v134 = vld [vmem:[%s2 + $0x388] sm:$0xff]
    %v135 = vld [vmem:[%s2 + $0x390] sm:$0xff]
    %v136 = vld [vmem:[%s2 + $0x398] sm:$0xff]
    %v137 = vld [vmem:[%s2 + $0x3a0] sm:$0xff]
    %v138 = vld [vmem:[%s2 + $0x3a8] sm:$0xff]
    %v139 = vld [vmem:[%s2 + $0x3b0] sm:$0xff]
    %v140 = vld [vmem:[%s2 + $0x3b8] sm:$0xff]
    %v141 = vld [vmem:[%s2 + $0x3c0] sm:$0xff]
    %v142 = vld [vmem:[%s2 + $0x3c8] sm:$0xff]
    %v143 = vld [vmem:[%s2 + $0x3d0] sm:$0xff]
    %v144 = vld [vmem:[%s2 + $0x3d8] sm:$0xff]
    %v145 = vld [vmem:[%s2 + $0x3e0] sm:$0xff]
    %v146 = vld [vmem:[%s2 + $0x3e8] sm:$0xff]
    %v147 = vld [vmem:[%s2 + $0x3f0] sm:$0xff]
    %v148 = vld [vmem:[%s2 + $0x3f8] sm:$0xff]
    %v149 = vld [vmem:[%s3] sm:$0xff]
    %v150 = vld [vmem:[%s3 + $0x8] sm:$0xff]
    %v151 = vld [vmem:[%s3 + $0x10] sm:$0xff]
    %v152 = vld [vmem:[%s3 + $0x18] sm:$0xff]
    %s153 = sld [smem:[#allocation2]]
    %s154 = smax.f32 %s153, 0.0
    %s155 = smin.f32 %s154, 1.0
    %v156 = vstv %s155
    %v159 = vcombine.high %v19, %v19
    %v161 = vunpack.c.l.s4 1983009808
    %v162 = vunpack.c.0.s8 %v161
    %v163 = vlaneseq
    %v164 = vshrl.u32 %v163, 7
    %v165 = vsub.s32 %v162, %v164
    %v166 = vrot.slane %v19, %v165
    %v168 = vunpack.c.l.s4 1983009808
    %v169 = vunpack.c.0.s8 %v168
    %v170 = vlaneseq
    %v171 = vshrl.u32 %v170, 7
    %v172 = vsub.s32 %v169, %v171
    %v173 = vrot.slane %v159, %v172
    %v174 = vcombine.high %v166, %v166
    %v175 = vcombine.high %v173, %v173
    %v176 = vcombine.high %v20, %v20
    %v178 = vunpack.c.l.s4 1983009808
    %v179 = vunpack.c.0.s8 %v178
    %v180 = vlaneseq
    %v181 = vshrl.u32 %v180, 7
    %v182 = vsub.s32 %v179, %v181
    %v183 = vrot.slane %v20, %v182
    %v185 = vunpack.c.l.s4 1983009808
    %v186 = vunpack.c.0.s8 %v185
    %v187 = vlaneseq
    %v188 = vshrl.u32 %v187, 7
    %v189 = vsub.s32 %v186, %v188
    %v190 = vrot.slane %v176, %v189
    %v191 = vcombine.high %v183, %v183
    %v192 = vcombine.high %v190, %v190
    %201 = vmatprep.subr.mxu0 0.0
    %202 = vmatpush1.msra.mxu0 %v21
    %203 = vmatprep.subr.mxu0 0.0
    %204 = vmatpush1.msra.mxu0 %v22
    %205 = vmatprep.subr.mxu0 0.0
    %206 = vmatpush1.msra.mxu0 %v23
    %207 = vmatprep.subr.mxu0 0.0
    %208 = vmatpush1.msra.mxu0 %v24
    %209 = vmatprep.subr.mxu0 0.0
    %210 = vmatpush1.msra.mxu0 %v25
    %211 = vmatprep.subr.mxu0 0.0
    %212 = vmatpush1.msra.mxu0 %v26
    %213 = vmatprep.subr.mxu0 0.0
    %214 = vmatpush1.msra.mxu0 %v27
    %215 = vmatprep.subr.mxu0 0.0
    %216 = vmatpush1.msra.mxu0 %v28
    %217 = vmatprep.subr.mxu0 0.0
    %218 = vmatpush1.msra.mxu0 %v29
    %219 = vmatprep.subr.mxu0 0.0
    %220 = vmatpush1.msra.mxu0 %v30
    %221 = vmatprep.subr.mxu0 0.0
    %222 = vmatpush1.msra.mxu0 %v31
    %223 = vmatprep.subr.mxu0 0.0
    %224 = vmatpush1.msra.mxu0 %v32
    %225 = vmatprep.subr.mxu0 0.0
    %226 = vmatpush1.msra.mxu0 %v33
    %227 = vmatprep.subr.mxu0 0.0
    %228 = vmatpush1.msra.mxu0 %v34
    %229 = vmatprep.subr.mxu0 0.0
    %230 = vmatpush1.msra.mxu0 %v35
    %231 = vmatprep.subr.mxu0 0.0
    %232 = vmatpush1.msra.mxu0 %v36
    %233 = vmatprep.subr.mxu0 0.0
    %234 = vmatpush1.msra.mxu0 %v37
    %235 = vmatprep.subr.mxu0 0.0
    %236 = vmatpush1.msra.mxu0 %v38
    %237 = vmatprep.subr.mxu0 0.0
    %238 = vmatpush1.msra.mxu0 %v39
    %239 = vmatprep.subr.mxu0 0.0
    %240 = vmatpush1.msra.mxu0 %v40
    %241 = vmatprep.subr.mxu0 0.0
    %242 = vmatpush1.msra.mxu0 %v41
    %243 = vmatprep.subr.mxu0 0.0
    %244 = vmatpush1.msra.mxu0 %v42
    %245 = vmatprep.subr.mxu0 0.0
    %246 = vmatpush1.msra.mxu0 %v43
    %247 = vmatprep.subr.mxu0 0.0
    %248 = vmatpush1.msra.mxu0 %v44
    %249 = vmatprep.subr.mxu0 0.0
    %250 = vmatpush1.msra.mxu0 %v45
    %251 = vmatprep.subr.mxu0 0.0
    %252 = vmatpush1.msra.mxu0 %v46
    %253 = vmatprep.subr.mxu0 0.0
    %254 = vmatpush1.msra.mxu0 %v47
    %255 = vmatprep.subr.mxu0 0.0
    %256 = vmatpush1.msra.mxu0 %v48
    %257 = vmatprep.subr.mxu0 0.0
    %258 = vmatpush1.msra.mxu0 %v49
    %259 = vmatprep.subr.mxu0 0.0
    %260 = vmatpush1.msra.mxu0 %v50
    %261 = vmatprep.subr.mxu0 0.0
    %262 = vmatpush1.msra.mxu0 %v51
    %263 = vmatprep.subr.mxu0 0.0
    %264 = vmatpush1.msra.mxu0 %v52
    %265 = vmatprep.mubr.f32.mxu0 %v174
    %266 = vmatmul.mubr.f32.gmra.mrb[0].mxu0 %v166
    %v267 = vpop.f32.mrb[0].mxu0
    %v268 = vadd.f32 0.0, %v267
    %v269 = vpop.f32.mrb[0].mxu0
    %270 = vdwg.mxu0
    %271 = vmatprep.subr.mxu0 0.0
    %272 = vmatpush1.msra.mxu0 %v53
    %273 = vmatprep.subr.mxu0 0.0
    %274 = vmatpush1.msra.mxu0 %v54
    %275 = vmatprep.subr.mxu0 0.0
    %276 = vmatpush1.msra.mxu0 %v55
    %277 = vmatprep.subr.mxu0 0.0
    %278 = vmatpush1.msra.mxu0 %v56
    %279 = vmatprep.subr.mxu0 0.0
    %280 = vmatpush1.msra.mxu0 %v57
    %281 = vmatprep.subr.mxu0 0.0
    %282 = vmatpush1.msra.mxu0 %v58
    %283 = vmatprep.subr.mxu0 0.0
    %284 = vmatpush1.msra.mxu0 %v59
    %285 = vmatprep.subr.mxu0 0.0
    %286 = vmatpush1.msra.mxu0 %v60
    %287 = vmatprep.subr.mxu0 0.0
    %288 = vmatpush1.msra.mxu0 %v61
    %289 = vmatprep.subr.mxu0 0.0
    %290 = vmatpush1.msra.mxu0 %v62
    %291 = vmatprep.subr.mxu0 0.0
    %292 = vmatpush1.msra.mxu0 %v63
    %293 = vmatprep.subr.mxu0 0.0
    %294 = vmatpush1.msra.mxu0 %v64
    %295 = vmatprep.subr.mxu0 0.0
    %296 = vmatpush1.msra.mxu0 %v65
    %297 = vmatprep.subr.mxu0 0.0
    %298 = vmatpush1.msra.mxu0 %v66
    %299 = vmatprep.subr.mxu0 0.0
    %300 = vmatpush1.msra.mxu0 %v67
    %301 = vmatprep.subr.mxu0 0.0
    %302 = vmatpush1.msra.mxu0 %v68
    %303 = vmatprep.subr.mxu0 0.0
    %304 = vmatpush1.msra.mxu0 %v69
    %305 = vmatprep.subr.mxu0 0.0
    %306 = vmatpush1.msra.mxu0 %v70
    %307 = vmatprep.subr.mxu0 0.0
    %308 = vmatpush1.msra.mxu0 %v71
    %309 = vmatprep.subr.mxu0 0.0
    %310 = vmatpush1.msra.mxu0 %v72
    %311 = vmatprep.subr.mxu0 0.0
    %312 = vmatpush1.msra.mxu0 %v73
    %313 = vmatprep.subr.mxu0 0.0
    %314 = vmatpush1.msra.mxu0 %v74
    %315 = vmatprep.subr.mxu0 0.0
    %316 = vmatpush1.msra.mxu0 %v75
    %317 = vmatprep.subr.mxu0 0.0
    %318 = vmatpush1.msra.mxu0 %v76
    %319 = vmatprep.subr.mxu0 0.0
    %320 = vmatpush1.msra.mxu0 %v77
    %321 = vmatprep.subr.mxu0 0.0
    %322 = vmatpush1.msra.mxu0 %v78
    %323 = vmatprep.subr.mxu0 0.0
    %324 = vmatpush1.msra.mxu0 %v79
    %325 = vmatprep.subr.mxu0 0.0
    %326 = vmatpush1.msra.mxu0 %v80
    %327 = vmatprep.subr.mxu0 0.0
    %328 = vmatpush1.msra.mxu0 %v81
    %329 = vmatprep.subr.mxu0 0.0
    %330 = vmatpush1.msra.mxu0 %v82
    %331 = vmatprep.subr.mxu0 0.0
    %332 = vmatpush1.msra.mxu0 %v83
    %333 = vmatprep.subr.mxu0 0.0
    %334 = vmatpush1.msra.mxu0 %v84
    %335 = vmatprep.mubr.f32.mxu0 %v175
    %336 = vmatmul.mubr.f32.gmra.mrb[0].mxu0 %v173
    %v337 = vpop.f32.mrb[0].mxu0
    %v338 = vadd.f32 %v268, %v337
    %v339 = vpop.f32.mrb[0].mxu0
    %340 = vdwg.mxu0
    %341 = vmatprep.subr.mxu0 0.0
    %342 = vmatpush1.msra.mxu0 %v85
    %343 = vmatprep.subr.mxu0 0.0
    %344 = vmatpush1.msra.mxu0 %v86
    %345 = vmatprep.subr.mxu0 0.0
    %346 = vmatpush1.msra.mxu0 %v87
    %347 = vmatprep.subr.mxu0 0.0
    %348 = vmatpush1.msra.mxu0 %v88
    %349 = vmatprep.subr.mxu0 0.0
    %350 = vmatpush1.msra.mxu0 %v89
    %351 = vmatprep.subr.mxu0 0.0
    %352 = vmatpush1.msra.mxu0 %v90
    %353 = vmatprep.subr.mxu0 0.0
    %354 = vmatpush1.msra.mxu0 %v91
    %355 = vmatprep.subr.mxu0 0.0
    %356 = vmatpush1.msra.mxu0 %v92
    %357 = vmatprep.subr.mxu0 0.0
    %358 = vmatpush1.msra.mxu0 %v93
    %359 = vmatprep.subr.mxu0 0.0
    %360 = vmatpush1.msra.mxu0 %v94
    %361 = vmatprep.subr.mxu0 0.0
    %362 = vmatpush1.msra.mxu0 %v95
    %363 = vmatprep.subr.mxu0 0.0
    %364 = vmatpush1.msra.mxu0 %v96
    %365 = vmatprep.subr.mxu0 0.0
    %366 = vmatpush1.msra.mxu0 %v97
    %367 = vmatprep.subr.mxu0 0.0
    %368 = vmatpush1.msra.mxu0 %v98
    %369 = vmatprep.subr.mxu0 0.0
    %370 = vmatpush1.msra.mxu0 %v99
    %371 = vmatprep.subr.mxu0 0.0
    %372 = vmatpush1.msra.mxu0 %v100
    %373 = vmatprep.subr.mxu0 0.0
    %374 = vmatpush1.msra.mxu0 %v101
    %375 = vmatprep.subr.mxu0 0.0
    %376 = vmatpush1.msra.mxu0 %v102
    %377 = vmatprep.subr.mxu0 0.0
    %378 = vmatpush1.msra.mxu0 %v103
    %379 = vmatprep.subr.mxu0 0.0
    %380 = vmatpush1.msra.mxu0 %v104
    %381 = vmatprep.subr.mxu0 0.0
    %382 = vmatpush1.msra.mxu0 %v105
    %383 = vmatprep.subr.mxu0 0.0
    %384 = vmatpush1.msra.mxu0 %v106
    %385 = vmatprep.subr.mxu0 0.0
    %386 = vmatpush1.msra.mxu0 %v107
    %387 = vmatprep.subr.mxu0 0.0
    %388 = vmatpush1.msra.mxu0 %v108
    %389 = vmatprep.subr.mxu0 0.0
    %390 = vmatpush1.msra.mxu0 %v109
    %391 = vmatprep.subr.mxu0 0.0
    %392 = vmatpush1.msra.mxu0 %v110
    %393 = vmatprep.subr.mxu0 0.0
    %394 = vmatpush1.msra.mxu0 %v111
    %395 = vmatprep.subr.mxu0 0.0
    %396 = vmatpush1.msra.mxu0 %v112
    %397 = vmatprep.subr.mxu0 0.0
    %398 = vmatpush1.msra.mxu0 %v113
    %399 = vmatprep.subr.mxu0 0.0
    %400 = vmatpush1.msra.mxu0 %v114
    %401 = vmatprep.subr.mxu0 0.0
    %402 = vmatpush1.msra.mxu0 %v115
    %403 = vmatprep.subr.mxu0 0.0
    %404 = vmatpush1.msra.mxu0 %v116
    %405 = vmatprep.mubr.f32.mxu0 %v191
    %406 = vmatmul.mubr.f32.gmra.mrb[0].mxu0 %v183
    %v407 = vpop.f32.mrb[0].mxu0
    %v408 = vadd.f32 %v338, %v407
    %v409 = vpop.f32.mrb[0].mxu0
    %410 = vdwg.mxu0
    %411 = vmatprep.subr.mxu0 0.0
    %412 = vmatpush1.msra.mxu0 %v117
    %413 = vmatprep.subr.mxu0 0.0
    %414 = vmatpush1.msra.mxu0 %v118
    %415 = vmatprep.subr.mxu0 0.0
    %416 = vmatpush1.msra.mxu0 %v119
    %417 = vmatprep.subr.mxu0 0.0
    %418 = vmatpush1.msra.mxu0 %v120
    %419 = vmatprep.subr.mxu0 0.0
    %420 = vmatpush1.msra.mxu0 %v121
    %421 = vmatprep.subr.mxu0 0.0
    %422 = vmatpush1.msra.mxu0 %v122
    %423 = vmatprep.subr.mxu0 0.0
    %424 = vmatpush1.msra.mxu0 %v123
    %425 = vmatprep.subr.mxu0 0.0
    %426 = vmatpush1.msra.mxu0 %v124
    %427 = vmatprep.subr.mxu0 0.0
    %428 = vmatpush1.msra.mxu0 %v125
    %429 = vmatprep.subr.mxu0 0.0
    %430 = vmatpush1.msra.mxu0 %v126
    %431 = vmatprep.subr.mxu0 0.0
    %432 = vmatpush1.msra.mxu0 %v127
    %433 = vmatprep.subr.mxu0 0.0
    %434 = vmatpush1.msra.mxu0 %v128
    %435 = vmatprep.subr.mxu0 0.0
    %436 = vmatpush1.msra.mxu0 %v129
    %437 = vmatprep.subr.mxu0 0.0
    %438 = vmatpush1.msra.mxu0 %v130
    %439 = vmatprep.subr.mxu0 0.0
    %440 = vmatpush1.msra.mxu0 %v131
    %441 = vmatprep.subr.mxu0 0.0
    %442 = vmatpush1.msra.mxu0 %v132
    %443 = vmatprep.subr.mxu0 0.0
    %444 = vmatpush1.msra.mxu0 %v133
    %445 = vmatprep.subr.mxu0 0.0
    %446 = vmatpush1.msra.mxu0 %v134
    %447 = vmatprep.subr.mxu0 0.0
    %448 = vmatpush1.msra.mxu0 %v135
    %449 = vmatprep.subr.mxu0 0.0
    %450 = vmatpush1.msra.mxu0 %v136
    %451 = vmatprep.subr.mxu0 0.0
    %452 = vmatpush1.msra.mxu0 %v137
    %453 = vmatprep.subr.mxu0 0.0
    %454 = vmatpush1.msra.mxu0 %v138
    %455 = vmatprep.subr.mxu0 0.0
    %456 = vmatpush1.msra.mxu0 %v139
    %457 = vmatprep.subr.mxu0 0.0
    %458 = vmatpush1.msra.mxu0 %v140
    %459 = vmatprep.subr.mxu0 0.0
    %460 = vmatpush1.msra.mxu0 %v141
    %461 = vmatprep.subr.mxu0 0.0
    %462 = vmatpush1.msra.mxu0 %v142
    %463 = vmatprep.subr.mxu0 0.0
    %464 = vmatpush1.msra.mxu0 %v143
    %465 = vmatprep.subr.mxu0 0.0
    %466 = vmatpush1.msra.mxu0 %v144
    %467 = vmatprep.subr.mxu0 0.0
    %468 = vmatpush1.msra.mxu0 %v145
    %469 = vmatprep.subr.mxu0 0.0
    %470 = vmatpush1.msra.mxu0 %v146
    %471 = vmatprep.subr.mxu0 0.0
    %472 = vmatpush1.msra.mxu0 %v147
    %473 = vmatprep.subr.mxu0 0.0
    %474 = vmatpush1.msra.mxu0 %v148
    %475 = vmatprep.mubr.f32.mxu0 %v192
    %476 = vmatmul.mubr.f32.gmra.mrb[0].mxu0 %v190
    %v477 = vpop.f32.mrb[0].mxu0
    %v478 = vadd.f32 %v408, %v477
    %v479 = vpop.f32.mrb[0].mxu0
    %480 = vdwg.mxu0
    %v481 = vsub.f32 %v478, 1.0
    %v482 = vadd.f32 %v478, 0.0
    %vm483 = vcmp.gt.f32.partialorder %v482, 1.0
    %v484 = vsel %vm483, 1, 0
    %v485 = vcvt.s32.f32 %v484
    %v486 = vmul.f32 %v482, 0.9
    %v487 = vsel %vm483, %v481, %v478
    %v488 = vadd.f32 %v486, %v487
    %vm489 = vcmp.gt.f32.partialorder %v488, 1.0
    %v490 = vsel %vm489, 1, 0
    %v491 = vcvt.s32.f32 %v490
    %v492 = vmul.f32 %v488, 0.9
    %v493 = vsel %vm489, %v481, %v478
    %v494 = vadd.f32 %v492, %v493
    %vm495 = vcmp.gt.f32.partialorder %v494, 1.0
    %v496 = vsel %vm495, 1, 0
    %v497 = vcvt.s32.f32 %v496
    %v498 = vmul.f32 %v494, 0.9
    %v499 = vsel %vm495, %v481, %v478
    %v500 = vadd.f32 %v498, %v499
    %vm501 = vcmp.gt.f32.partialorder %v500, 1.0
    %v502 = vsel %vm501, 1, 0
    %v503 = vcvt.s32.f32 %v502
    %v504 = vmul.f32 %v500, 0.9
    %v505 = vsel %vm501, %v481, %v478
    %v506 = vadd.f32 %v504, %v505
    %vm507 = vcmp.gt.f32.partialorder %v506, 1.0
    %v508 = vsel %vm507, 1, 0
    %v509 = vcvt.s32.f32 %v508
    %v510 = vmul.f32 %v506, 0.9
    %v511 = vsel %vm507, %v481, %v478
    %v512 = vadd.f32 %v510, %v511
    %vm513 = vcmp.gt.f32.partialorder %v512, 1.0
    %v514 = vsel %vm513, 1, 0
    %v515 = vcvt.s32.f32 %v514
    %v516 = vmul.f32 %v512, 0.9
    %v517 = vsel %vm513, %v481, %v478
    %v518 = vadd.f32 %v516, %v517
    %vm519 = vcmp.gt.f32.partialorder %v518, 1.0
    %v520 = vsel %vm519, 1, 0
    %v521 = vcvt.s32.f32 %v520
    %v522 = vmul.f32 %v518, 0.9
    %v523 = vsel %vm519, %v481, %v478
    %v524 = vadd.f32 %v522, %v523
    %vm525 = vcmp.gt.f32.partialorder %v524, 1.0
    %v526 = vsel %vm525, 1, 0
    %v527 = vcvt.s32.f32 %v526
    %v528 = vmul.f32 %v524, 0.9
    %v529 = vsel %vm525, %v481, %v478
    %v530 = vadd.f32 %v528, %v529
    %vm531 = vcmp.gt.f32.partialorder %v530, 1.0
    %v532 = vsel %vm531, 1, 0
    %v533 = vcvt.s32.f32 %v532
    %v534 = vmul.f32 %v530, 0.9
    %v535 = vsel %vm531, %v481, %v478
    %v536 = vadd.f32 %v534, %v535
    %vm537 = vcmp.gt.f32.partialorder %v536, 1.0
    %v538 = vsel %vm537, 1, 0
    %v539 = vcvt.s32.f32 %v538
    %vm540 = vcmask 261120
    %v542 = vsel %vm540, %v485, 0
    %544 = vmatprep.subr.mxu0 0.0
    %545 = vmatpush1.msra.mxu0 %v149
    %546 = vmatprep.subr.mxu0 0.0
    %547 = vmatpush1.msra.mxu0 %v150
    %548 = vmatprep.subr.mxu0 0.0
    %549 = vmatpush1.msra.mxu0 %v151
    %550 = vmatprep.subr.mxu0 0.0
    %551 = vmatpush1.msra.mxu0 %v152
    %552 = vmatprep.subr.mxu0 0.0
    %553 = vmatpush1.msra.mxu0 0.0
    %554 = vmatprep.subr.mxu0 0.0
    %555 = vmatpush1.msra.mxu0 0.0
    %556 = vmatprep.subr.mxu0 0.0
    %557 = vmatpush1.msra.mxu0 0.0
    %558 = vmatprep.subr.mxu0 0.0
    %559 = vmatpush1.msra.mxu0 0.0
    %560 = vmatprep.subr.mxu0 0.0
    %561 = vmatpush1.msra.mxu0 0.0
    %562 = vmatprep.subr.mxu0 0.0
    %563 = vmatpush1.msra.mxu0 0.0
    %564 = vmatprep.subr.mxu0 0.0
    %565 = vmatpush1.msra.mxu0 0.0
    %566 = vmatprep.subr.mxu0 0.0
    %567 = vmatpush1.msra.mxu0 0.0
    %568 = vmatprep.subr.mxu0 0.0
    %569 = vmatpush1.msra.mxu0 0.0
    %570 = vmatprep.subr.mxu0 0.0
    %571 = vmatpush1.msra.mxu0 0.0
    %572 = vmatprep.subr.mxu0 0.0
    %573 = vmatpush1.msra.mxu0 0.0
    %574 = vmatprep.subr.mxu0 0.0
    %575 = vmatpush1.msra.mxu0 0.0
    %576 = vmatprep.subr.mxu0 0.0
    %577 = vmatpush1.msra.mxu0 0.0
    %578 = vmatprep.subr.mxu0 0.0
    %579 = vmatpush1.msra.mxu0 0.0
    %580 = vmatprep.subr.mxu0 0.0
    %581 = vmatpush1.msra.mxu0 0.0
    %582 = vmatprep.subr.mxu0 0.0
    %583 = vmatpush1.msra.mxu0 0.0
    %584 = vmatprep.subr.mxu0 0.0
    %585 = vmatpush1.msra.mxu0 0.0
    %586 = vmatprep.subr.mxu0 0.0
    %587 = vmatpush1.msra.mxu0 0.0
    %588 = vmatprep.subr.mxu0 0.0
    %589 = vmatpush1.msra.mxu0 0.0
    %590 = vmatprep.subr.mxu0 0.0
    %591 = vmatpush1.msra.mxu0 0.0
    %592 = vmatprep.subr.mxu0 0.0
    %593 = vmatpush1.msra.mxu0 0.0
    %594 = vmatprep.subr.mxu0 0.0
    %595 = vmatpush1.msra.mxu0 0.0
    %596 = vmatprep.subr.mxu0 0.0
    %597 = vmatpush1.msra.mxu0 0.0
    %598 = vmatprep.subr.mxu0 0.0
    %599 = vmatpush1.msra.mxu0 0.0
    %600 = vmatprep.subr.mxu0 0.0
    %601 = vmatpush1.msra.mxu0 0.0
    %602 = vmatprep.subr.mxu0 0.0
    %603 = vmatpush1.msra.mxu0 0.0
    %604 = vmatprep.subr.mxu0 0.0
    %605 = vmatpush1.msra.mxu0 0.0
    %606 = vmatprep.subr.mxu0 0.0
    %607 = vmatpush1.msra.mxu0 0.0
    %608 = vmatprep.mubr.f32.mxu0 0.0
    %609 = vmatmul.mubr.f32.gmra.mrb[0].mxu0 %v542
    %v610 = vpop.f32.mrb[0].mxu0
    %v611 = vadd.f32 0.0, %v610
    %v612 = vpop.f32.mrb[0].mxu0
    %613 = vdwg.mxu0
    %v615 = vsel %vm540, %v491, 0
    %617 = vmatprep.subr.mxu0 0.0
    %618 = vmatpush1.msra.mxu0 %v149
    %619 = vmatprep.subr.mxu0 0.0
    %620 = vmatpush1.msra.mxu0 %v150
    %621 = vmatprep.subr.mxu0 0.0
    %622 = vmatpush1.msra.mxu0 %v151
    %623 = vmatprep.subr.mxu0 0.0
    %624 = vmatpush1.msra.mxu0 %v152
    %625 = vmatprep.subr.mxu0 0.0
    %626 = vmatpush1.msra.mxu0 0.0
    %627 = vmatprep.subr.mxu0 0.0
    %628 = vmatpush1.msra.mxu0 0.0
    %629 = vmatprep.subr.mxu0 0.0
    %630 = vmatpush1.msra.mxu0 0.0
    %631 = vmatprep.subr.mxu0 0.0
    %632 = vmatpush1.msra.mxu0 0.0
    %633 = vmatprep.subr.mxu0 0.0
    %634 = vmatpush1.msra.mxu0 0.0
    %635 = vmatprep.subr.mxu0 0.0
    %636 = vmatpush1.msra.mxu0 0.0
    %637 = vmatprep.subr.mxu0 0.0
    %638 = vmatpush1.msra.mxu0 0.0
    %639 = vmatprep.subr.mxu0 0.0
    %640 = vmatpush1.msra.mxu0 0.0
    %641 = vmatprep.subr.mxu0 0.0
    %642 = vmatpush1.msra.mxu0 0.0
    %643 = vmatprep.subr.mxu0 0.0
    %644 = vmatpush1.msra.mxu0 0.0
    %645 = vmatprep.subr.mxu0 0.0
    %646 = vmatpush1.msra.mxu0 0.0
    %647 = vmatprep.subr.mxu0 0.0
    %648 = vmatpush1.msra.mxu0 0.0
    %649 = vmatprep.subr.mxu0 0.0
    %650 = vmatpush1.msra.mxu0 0.0
    %651 = vmatprep.subr.mxu0 0.0
    %652 = vmatpush1.msra.mxu0 0.0
    %653 = vmatprep.subr.mxu0 0.0
    %654 = vmatpush1.msra.mxu0 0.0
    %655 = vmatprep.subr.mxu0 0.0
    %656 = vmatpush1.msra.mxu0 0.0
    %657 = vmatprep.subr.mxu0 0.0
    %658 = vmatpush1.msra.mxu0 0.0
    %659 = vmatprep.subr.mxu0 0.0
    %660 = vmatpush1.msra.mxu0 0.0
    %661 = vmatprep.subr.mxu0 0.0
    %662 = vmatpush1.msra.mxu0 0.0
    %663 = vmatprep.subr.mxu0 0.0
    %664 = vmatpush1.msra.mxu0 0.0
    %665 = vmatprep.subr.mxu0 0.0
    %666 = vmatpush1.msra.mxu0 0.0
    %667 = vmatprep.subr.mxu0 0.0
    %668 = vmatpush1.msra.mxu0 0.0
    %669 = vmatprep.subr.mxu0 0.0
    %670 = vmatpush1.msra.mxu0 0.0
    %671 = vmatprep.subr.mxu0 0.0
    %672 = vmatpush1.msra.mxu0 0.0
    %673 = vmatprep.subr.mxu0 0.0
    %674 = vmatpush1.msra.mxu0 0.0
    %675 = vmatprep.subr.mxu0 0.0
    %676 = vmatpush1.msra.mxu0 0.0
    %677 = vmatprep.subr.mxu0 0.0
    %678 = vmatpush1.msra.mxu0 0.0
    %679 = vmatprep.subr.mxu0 0.0
    %680 = vmatpush1.msra.mxu0 0.0
    %681 = vmatprep.mubr.f32.mxu0 0.0
    %682 = vmatmul.mubr.f32.gmra.mrb[0].mxu0 %v615
    %v683 = vpop.f32.mrb[0].mxu0
    %v684 = vadd.f32 0.0, %v683
    %v685 = vpop.f32.mrb[0].mxu0
    %686 = vdwg.mxu0
    %v688 = vsel %vm540, %v497, 0
    %690 = vmatprep.subr.mxu0 0.0
    %691 = vmatpush1.msra.mxu0 %v149
    %692 = vmatprep.subr.mxu0 0.0
    %693 = vmatpush1.msra.mxu0 %v150
    %694 = vmatprep.subr.mxu0 0.0
    %695 = vmatpush1.msra.mxu0 %v151
    %696 = vmatprep.subr.mxu0 0.0
    %697 = vmatpush1.msra.mxu0 %v152
    %698 = vmatprep.subr.mxu0 0.0
    %699 = vmatpush1.msra.mxu0 0.0
    %700 = vmatprep.subr.mxu0 0.0
    %701 = vmatpush1.msra.mxu0 0.0
    %702 = vmatprep.subr.mxu0 0.0
    %703 = vmatpush1.msra.mxu0 0.0
    %704 = vmatprep.subr.mxu0 0.0
    %705 = vmatpush1.msra.mxu0 0.0
    %706 = vmatprep.subr.mxu0 0.0
    %707 = vmatpush1.msra.mxu0 0.0
    %708 = vmatprep.subr.mxu0 0.0
    %709 = vmatpush1.msra.mxu0 0.0
    %710 = vmatprep.subr.mxu0 0.0
    %711 = vmatpush1.msra.mxu0 0.0
    %712 = vmatprep.subr.mxu0 0.0
    %713 = vmatpush1.msra.mxu0 0.0
    %714 = vmatprep.subr.mxu0 0.0
    %715 = vmatpush1.msra.mxu0 0.0
    %716 = vmatprep.subr.mxu0 0.0
    %717 = vmatpush1.msra.mxu0 0.0
    %718 = vmatprep.subr.mxu0 0.0
    %719 = vmatpush1.msra.mxu0 0.0
    %720 = vmatprep.subr.mxu0 0.0
    %721 = vmatpush1.msra.mxu0 0.0
    %722 = vmatprep.subr.mxu0 0.0
    %723 = vmatpush1.msra.mxu0 0.0
    %724 = vmatprep.subr.mxu0 0.0
    %725 = vmatpush1.msra.mxu0 0.0
    %726 = vmatprep.subr.mxu0 0.0
    %727 = vmatpush1.msra.mxu0 0.0
    %728 = vmatprep.subr.mxu0 0.0
    %729 = vmatpush1.msra.mxu0 0.0
    %730 = vmatprep.subr.mxu0 0.0
    %731 = vmatpush1.msra.mxu0 0.0
    %732 = vmatprep.subr.mxu0 0.0
    %733 = vmatpush1.msra.mxu0 0.0
    %734 = vmatprep.subr.mxu0 0.0
    %735 = vmatpush1.msra.mxu0 0.0
    %736 = vmatprep.subr.mxu0 0.0
    %737 = vmatpush1.msra.mxu0 0.0
    %738 = vmatprep.subr.mxu0 0.0
    %739 = vmatpush1.msra.mxu0 0.0
    %740 = vmatprep.subr.mxu0 0.0
    %741 = vmatpush1.msra.mxu0 0.0
    %742 = vmatprep.subr.mxu0 0.0
    %743 = vmatpush1.msra.mxu0 0.0
    %744 = vmatprep.subr.mxu0 0.0
    %745 = vmatpush1.msra.mxu0 0.0
    %746 = vmatprep.subr.mxu0 0.0
    %747 = vmatpush1.msra.mxu0 0.0
    %748 = vmatprep.subr.mxu0 0.0
    %749 = vmatpush1.msra.mxu0 0.0
    %750 = vmatprep.subr.mxu0 0.0
    %751 = vmatpush1.msra.mxu0 0.0
    %752 = vmatprep.subr.mxu0 0.0
    %753 = vmatpush1.msra.mxu0 0.0
    %754 = vmatprep.mubr.f32.mxu0 0.0
    %755 = vmatmul.mubr.f32.gmra.mrb[0].mxu0 %v688
    %v756 = vpop.f32.mrb[0].mxu0
    %v757 = vadd.f32 0.0, %v756
    %v758 = vpop.f32.mrb[0].mxu0
    %759 = vdwg.mxu0
    %v761 = vsel %vm540, %v503, 0
    %763 = vmatprep.subr.mxu0 0.0
    %764 = vmatpush1.msra.mxu0 %v149
    %765 = vmatprep.subr.mxu0 0.0
    %766 = vmatpush1.msra.mxu0 %v150
    %767 = vmatprep.subr.mxu0 0.0
    %768 = vmatpush1.msra.mxu0 %v151
    %769 = vmatprep.subr.mxu0 0.0
    %770 = vmatpush1.msra.mxu0 %v152
    %771 = vmatprep.subr.mxu0 0.0
    %772 = vmatpush1.msra.mxu0 0.0
    %773 = vmatprep.subr.mxu0 0.0
    %774 = vmatpush1.msra.mxu0 0.0
    %775 = vmatprep.subr.mxu0 0.0
    %776 = vmatpush1.msra.mxu0 0.0
    %777 = vmatprep.subr.mxu0 0.0
    %778 = vmatpush1.msra.mxu0 0.0
    %779 = vmatprep.subr.mxu0 0.0
    %780 = vmatpush1.msra.mxu0 0.0
    %781 = vmatprep.subr.mxu0 0.0
    %782 = vmatpush1.msra.mxu0 0.0
    %783 = vmatprep.subr.mxu0 0.0
    %784 = vmatpush1.msra.mxu0 0.0
    %785 = vmatprep.subr.mxu0 0.0
    %786 = vmatpush1.msra.mxu0 0.0
    %787 = vmatprep.subr.mxu0 0.0
    %788 = vmatpush1.msra.mxu0 0.0
    %789 = vmatprep.subr.mxu0 0.0
    %790 = vmatpush1.msra.mxu0 0.0
    %791 = vmatprep.subr.mxu0 0.0
    %792 = vmatpush1.msra.mxu0 0.0
    %793 = vmatprep.subr.mxu0 0.0
    %794 = vmatpush1.msra.mxu0 0.0
    %795 = vmatprep.subr.mxu0 0.0
    %796 = vmatpush1.msra.mxu0 0.0
    %797 = vmatprep.subr.mxu0 0.0
    %798 = vmatpush1.msra.mxu0 0.0
    %799 = vmatprep.subr.mxu0 0.0
    %800 = vmatpush1.msra.mxu0 0.0
    %801 = vmatprep.subr.mxu0 0.0
    %802 = vmatpush1.msra.mxu0 0.0
    %803 = vmatprep.subr.mxu0 0.0
    %804 = vmatpush1.msra.mxu0 0.0
    %805 = vmatprep.subr.mxu0 0.0
    %806 = vmatpush1.msra.mxu0 0.0
    %807 = vmatprep.subr.mxu0 0.0
    %808 = vmatpush1.msra.mxu0 0.0
    %809 = vmatprep.subr.mxu0 0.0
    %810 = vmatpush1.msra.mxu0 0.0
    %811 = vmatprep.subr.mxu0 0.0
    %812 = vmatpush1.msra.mxu0 0.0
    %813 = vmatprep.subr.mxu0 0.0
    %814 = vmatpush1.msra.mxu0 0.0
    %815 = vmatprep.subr.mxu0 0.0
    %816 = vmatpush1.msra.mxu0 0.0
    %817 = vmatprep.subr.mxu0 0.0
    %818 = vmatpush1.msra.mxu0 0.0
    %819 = vmatprep.subr.mxu0 0.0
    %820 = vmatpush1.msra.mxu0 0.0
    %821 = vmatprep.subr.mxu0 0.0
    %822 = vmatpush1.msra.mxu0 0.0
    %823 = vmatprep.subr.mxu0 0.0
    %824 = vmatpush1.msra.mxu0 0.0
    %825 = vmatprep.subr.mxu0 0.0
    %826 = vmatpush1.msra.mxu0 0.0
    %827 = vmatprep.mubr.f32.mxu0 0.0
    %828 = vmatmul.mubr.f32.gmra.mrb[0].mxu0 %v761
    %v829 = vpop.f32.mrb[0].mxu0
    %v830 = vadd.f32 0.0, %v829
    %v831 = vpop.f32.mrb[0].mxu0
    %832 = vdwg.mxu0
    %v834 = vsel %vm540, %v509, 0
    %836 = vmatprep.subr.mxu0 0.0
    %837 = vmatpush1.msra.mxu0 %v149
    %838 = vmatprep.subr.mxu0 0.0
    %839 = vmatpush1.msra.mxu0 %v150
    %840 = vmatprep.subr.mxu0 0.0
    %841 = vmatpush1.msra.mxu0 %v151
    %842 = vmatprep.subr.mxu0 0.0
    %843 = vmatpush1.msra.mxu0 %v152
    %844 = vmatprep.subr.mxu0 0.0
    %845 = vmatpush1.msra.mxu0 0.0
    %846 = vmatprep.subr.mxu0 0.0
    %847 = vmatpush1.msra.mxu0 0.0
    %848 = vmatprep.subr.mxu0 0.0
    %849 = vmatpush1.msra.mxu0 0.0
    %850 = vmatprep.subr.mxu0 0.0
    %851 = vmatpush1.msra.mxu0 0.0
    %852 = vmatprep.subr.mxu0 0.0
    %853 = vmatpush1.msra.mxu0 0.0
    %854 = vmatprep.subr.mxu0 0.0
    %855 = vmatpush1.msra.mxu0 0.0
    %856 = vmatprep.subr.mxu0 0.0
    %857 = vmatpush1.msra.mxu0 0.0
    %858 = vmatprep.subr.mxu0 0.0
    %859 = vmatpush1.msra.mxu0 0.0
    %860 = vmatprep.subr.mxu0 0.0
    %861 = vmatpush1.msra.mxu0 0.0
    %862 = vmatprep.subr.mxu0 0.0
    %863 = vmatpush1.msra.mxu0 0.0
    %864 = vmatprep.subr.mxu0 0.0
    %865 = vmatpush1.msra.mxu0 0.0
    %866 = vmatprep.subr.mxu0 0.0
    %867 = vmatpush1.msra.mxu0 0.0
    %868 = vmatprep.subr.mxu0 0.0
    %869 = vmatpush1.msra.mxu0 0.0
    %870 = vmatprep.subr.mxu0 0.0
    %871 = vmatpush1.msra.mxu0 0.0
    %872 = vmatprep.subr.mxu0 0.0
    %873 = vmatpush1.msra.mxu0 0.0
    %874 = vmatprep.subr.mxu0 0.0
    %875 = vmatpush1.msra.mxu0 0.0
    %876 = vmatprep.subr.mxu0 0.0
    %877 = vmatpush1.msra.mxu0 0.0
    %878 = vmatprep.subr.mxu0 0.0
    %879 = vmatpush1.msra.mxu0 0.0
    %880 = vmatprep.subr.mxu0 0.0
    %881 = vmatpush1.msra.mxu0 0.0
    %882 = vmatprep.subr.mxu0 0.0
    %883 = vmatpush1.msra.mxu0 0.0
    %884 = vmatprep.subr.mxu0 0.0
    %885 = vmatpush1.msra.mxu0 0.0
    %886 = vmatprep.subr.mxu0 0.0
    %887 = vmatpush1.msra.mxu0 0.0
    %888 = vmatprep.subr.mxu0 0.0
    %889 = vmatpush1.msra.mxu0 0.0
    %890 = vmatprep.subr.mxu0 0.0
    %891 = vmatpush1.msra.mxu0 0.0
    %892 = vmatprep.subr.mxu0 0.0
    %893 = vmatpush1.msra.mxu0 0.0
    %894 = vmatprep.subr.mxu0 0.0
    %895 = vmatpush1.msra.mxu0 0.0
    %896 = vmatprep.subr.mxu0 0.0
    %897 = vmatpush1.msra.mxu0 0.0
    %898 = vmatprep.subr.mxu0 0.0
    %899 = vmatpush1.msra.mxu0 0.0
    %900 = vmatprep.mubr.f32.mxu0 0.0
    %901 = vmatmul.mubr.f32.gmra.mrb[0].mxu0 %v834
    %v902 = vpop.f32.mrb[0].mxu0
    %v903 = vadd.f32 0.0, %v902
    %v904 = vpop.f32.mrb[0].mxu0
    %905 = vdwg.mxu0
    %v907 = vsel %vm540, %v515, 0
    %909 = vmatprep.subr.mxu0 0.0
    %910 = vmatpush1.msra.mxu0 %v149
    %911 = vmatprep.subr.mxu0 0.0
    %912 = vmatpush1.msra.mxu0 %v150
    %913 = vmatprep.subr.mxu0 0.0
    %914 = vmatpush1.msra.mxu0 %v151
    %915 = vmatprep.subr.mxu0 0.0
    %916 = vmatpush1.msra.mxu0 %v152
    %917 = vmatprep.subr.mxu0 0.0
    %918 = vmatpush1.msra.mxu0 0.0
    %919 = vmatprep.subr.mxu0 0.0
    %920 = vmatpush1.msra.mxu0 0.0
    %921 = vmatprep.subr.mxu0 0.0
    %922 = vmatpush1.msra.mxu0 0.0
    %923 = vmatprep.subr.mxu0 0.0
    %924 = vmatpush1.msra.mxu0 0.0
    %925 = vmatprep.subr.mxu0 0.0
    %926 = vmatpush1.msra.mxu0 0.0
    %927 = vmatprep.subr.mxu0 0.0
    %928 = vmatpush1.msra.mxu0 0.0
    %929 = vmatprep.subr.mxu0 0.0
    %930 = vmatpush1.msra.mxu0 0.0
    %931 = vmatprep.subr.mxu0 0.0
    %932 = vmatpush1.msra.mxu0 0.0
    %933 = vmatprep.subr.mxu0 0.0
    %934 = vmatpush1.msra.mxu0 0.0
    %935 = vmatprep.subr.mxu0 0.0
    %936 = vmatpush1.msra.mxu0 0.0
    %937 = vmatprep.subr.mxu0 0.0
    %938 = vmatpush1.msra.mxu0 0.0
    %939 = vmatprep.subr.mxu0 0.0
    %940 = vmatpush1.msra.mxu0 0.0
    %941 = vmatprep.subr.mxu0 0.0
    %942 = vmatpush1.msra.mxu0 0.0
    %943 = vmatprep.subr.mxu0 0.0
    %944 = vmatpush1.msra.mxu0 0.0
    %945 = vmatprep.subr.mxu0 0.0
    %946 = vmatpush1.msra.mxu0 0.0
    %947 = vmatprep.subr.mxu0 0.0
    %948 = vmatpush1.msra.mxu0 0.0
    %949 = vmatprep.subr.mxu0 0.0
    %950 = vmatpush1.msra.mxu0 0.0
    %951 = vmatprep.subr.mxu0 0.0
    %952 = vmatpush1.msra.mxu0 0.0
    %953 = vmatprep.subr.mxu0 0.0
    %954 = vmatpush1.msra.mxu0 0.0
    %955 = vmatprep.subr.mxu0 0.0
    %956 = vmatpush1.msra.mxu0 0.0
    %957 = vmatprep.subr.mxu0 0.0
    %958 = vmatpush1.msra.mxu0 0.0
    %959 = vmatprep.subr.mxu0 0.0
    %960 = vmatpush1.msra.mxu0 0.0
    %961 = vmatprep.subr.mxu0 0.0
    %962 = vmatpush1.msra.mxu0 0.0
    %963 = vmatprep.subr.mxu0 0.0
    %964 = vmatpush1.msra.mxu0 0.0
    %965 = vmatprep.subr.mxu0 0.0
    %966 = vmatpush1.msra.mxu0 0.0
    %967 = vmatprep.subr.mxu0 0.0
    %968 = vmatpush1.msra.mxu0 0.0
    %969 = vmatprep.subr.mxu0 0.0
    %970 = vmatpush1.msra.mxu0 0.0
    %971 = vmatprep.subr.mxu0 0.0
    %972 = vmatpush1.msra.mxu0 0.0
    %973 = vmatprep.mubr.f32.mxu0 0.0
    %974 = vmatmul.mubr.f32.gmra.mrb[0].mxu0 %v907
    %v975 = vpop.f32.mrb[0].mxu0
    %v976 = vadd.f32 0.0, %v975
    %v977 = vpop.f32.mrb[0].mxu0
    %978 = vdwg.mxu0
    %v980 = vsel %vm540, %v521, 0
    %982 = vmatprep.subr.mxu0 0.0
    %983 = vmatpush1.msra.mxu0 %v149
    %984 = vmatprep.subr.mxu0 0.0
    %985 = vmatpush1.msra.mxu0 %v150
    %986 = vmatprep.subr.mxu0 0.0
    %987 = vmatpush1.msra.mxu0 %v151
    %988 = vmatprep.subr.mxu0 0.0
    %989 = vmatpush1.msra.mxu0 %v152
    %990 = vmatprep.subr.mxu0 0.0
    %991 = vmatpush1.msra.mxu0 0.0
    %992 = vmatprep.subr.mxu0 0.0
    %993 = vmatpush1.msra.mxu0 0.0
    %994 = vmatprep.subr.mxu0 0.0
    %995 = vmatpush1.msra.mxu0 0.0
    %996 = vmatprep.subr.mxu0 0.0
    %997 = vmatpush1.msra.mxu0 0.0
    %998 = vmatprep.subr.mxu0 0.0
    %999 = vmatpush1.msra.mxu0 0.0
    %1000 = vmatprep.subr.mxu0 0.0
    %1001 = vmatpush1.msra.mxu0 0.0
    %1002 = vmatprep.subr.mxu0 0.0
    %1003 = vmatpush1.msra.mxu0 0.0
    %1004 = vmatprep.subr.mxu0 0.0
    %1005 = vmatpush1.msra.mxu0 0.0
    %1006 = vmatprep.subr.mxu0 0.0
    %1007 = vmatpush1.msra.mxu0 0.0
    %1008 = vmatprep.subr.mxu0 0.0
    %1009 = vmatpush1.msra.mxu0 0.0
    %1010 = vmatprep.subr.mxu0 0.0
    %1011 = vmatpush1.msra.mxu0 0.0
    %1012 = vmatprep.subr.mxu0 0.0
    %1013 = vmatpush1.msra.mxu0 0.0
    %1014 = vmatprep.subr.mxu0 0.0
    %1015 = vmatpush1.msra.mxu0 0.0
    %1016 = vmatprep.subr.mxu0 0.0
    %1017 = vmatpush1.msra.mxu0 0.0
    %1018 = vmatprep.subr.mxu0 0.0
    %1019 = vmatpush1.msra.mxu0 0.0
    %1020 = vmatprep.subr.mxu0 0.0
    %1021 = vmatpush1.msra.mxu0 0.0
    %1022 = vmatprep.subr.mxu0 0.0
    %1023 = vmatpush1.msra.mxu0 0.0
    %1024 = vmatprep.subr.mxu0 0.0
    %1025 = vmatpush1.msra.mxu0 0.0
    %1026 = vmatprep.subr.mxu0 0.0
    %1027 = vmatpush1.msra.mxu0 0.0
    %1028 = vmatprep.subr.mxu0 0.0
    %1029 = vmatpush1.msra.mxu0 0.0
    %1030 = vmatprep.subr.mxu0 0.0
    %1031 = vmatpush1.msra.mxu0 0.0
    %1032 = vmatprep.subr.mxu0 0.0
    %1033 = vmatpush1.msra.mxu0 0.0
    %1034 = vmatprep.subr.mxu0 0.0
    %1035 = vmatpush1.msra.mxu0 0.0
    %1036 = vmatprep.subr.mxu0 0.0
    %1037 = vmatpush1.msra.mxu0 0.0
    %1038 = vmatprep.subr.mxu0 0.0
    %1039 = vmatpush1.msra.mxu0 0.0
    %1040 = vmatprep.subr.mxu0 0.0
    %1041 = vmatpush1.msra.mxu0 0.0
    %1042 = vmatprep.subr.mxu0 0.0
    %1043 = vmatpush1.msra.mxu0 0.0
    %1044 = vmatprep.subr.mxu0 0.0
    %1045 = vmatpush1.msra.mxu0 0.0
    %1046 = vmatprep.mubr.f32.mxu0 0.0
    %1047 = vmatmul.mubr.f32.gmra.mrb[0].mxu0 %v980
    %v1048 = vpop.f32.mrb[0].mxu0
    %v1049 = vadd.f32 0.0, %v1048
    %v1050 = vpop.f32.mrb[0].mxu0
    %1051 = vdwg.mxu0
    %v1053 = vsel %vm540, %v527, 0
    %1055 = vmatprep.subr.mxu0 0.0
    %1056 = vmatpush1.msra.mxu0 %v149
    %1057 = vmatprep.subr.mxu0 0.0
    %1058 = vmatpush1.msra.mxu0 %v150
    %1059 = vmatprep.subr.mxu0 0.0
    %1060 = vmatpush1.msra.mxu0 %v151
    %1061 = vmatprep.subr.mxu0 0.0
    %1062 = vmatpush1.msra.mxu0 %v152
    %1063 = vmatprep.subr.mxu0 0.0
    %1064 = vmatpush1.msra.mxu0 0.0
    %1065 = vmatprep.subr.mxu0 0.0
    %1066 = vmatpush1.msra.mxu0 0.0
    %1067 = vmatprep.subr.mxu0 0.0
    %1068 = vmatpush1.msra.mxu0 0.0
    %1069 = vmatprep.subr.mxu0 0.0
    %1070 = vmatpush1.msra.mxu0 0.0
    %1071 = vmatprep.subr.mxu0 0.0
    %1072 = vmatpush1.msra.mxu0 0.0
    %1073 = vmatprep.subr.mxu0 0.0
    %1074 = vmatpush1.msra.mxu0 0.0
    %1075 = vmatprep.subr.mxu0 0.0
    %1076 = vmatpush1.msra.mxu0 0.0
    %1077 = vmatprep.subr.mxu0 0.0
    %1078 = vmatpush1.msra.mxu0 0.0
    %1079 = vmatprep.subr.mxu0 0.0
    %1080 = vmatpush1.msra.mxu0 0.0
    %1081 = vmatprep.subr.mxu0 0.0
    %1082 = vmatpush1.msra.mxu0 0.0
    %1083 = vmatprep.subr.mxu0 0.0
    %1084 = vmatpush1.msra.mxu0 0.0
    %1085 = vmatprep.subr.mxu0 0.0
    %1086 = vmatpush1.msra.mxu0 0.0
    %1087 = vmatprep.subr.mxu0 0.0
    %1088 = vmatpush1.msra.mxu0 0.0
    %1089 = vmatprep.subr.mxu0 0.0
    %1090 = vmatpush1.msra.mxu0 0.0
    %1091 = vmatprep.subr.mxu0 0.0
    %1092 = vmatpush1.msra.mxu0 0.0
    %1093 = vmatprep.subr.mxu0 0.0
    %1094 = vmatpush1.msra.mxu0 0.0
    %1095 = vmatprep.subr.mxu0 0.0
    %1096 = vmatpush1.msra.mxu0 0.0
    %1097 = vmatprep.subr.mxu0 0.0
    %1098 = vmatpush1.msra.mxu0 0.0
    %1099 = vmatprep.subr.mxu0 0.0
    %1100 = vmatpush1.msra.mxu0 0.0
    %1101 = vmatprep.subr.mxu0 0.0
    %1102 = vmatpush1.msra.mxu0 0.0
    %1103 = vmatprep.subr.mxu0 0.0
    %1104 = vmatpush1.msra.mxu0 0.0
    %1105 = vmatprep.subr.mxu0 0.0
    %1106 = vmatpush1.msra.mxu0 0.0
    %1107 = vmatprep.subr.mxu0 0.0
    %1108 = vmatpush1.msra.mxu0 0.0
    %1109 = vmatprep.subr.mxu0 0.0
    %1110 = vmatpush1.msra.mxu0 0.0
    %1111 = vmatprep.subr.mxu0 0.0
    %1112 = vmatpush1.msra.mxu0 0.0
    %1113 = vmatprep.subr.mxu0 0.0
    %1114 = vmatpush1.msra.mxu0 0.0
    %1115 = vmatprep.subr.mxu0 0.0
    %1116 = vmatpush1.msra.mxu0 0.0
    %1117 = vmatprep.subr.mxu0 0.0
    %1118 = vmatpush1.msra.mxu0 0.0
    %1119 = vmatprep.mubr.f32.mxu0 0.0
    %1120 = vmatmul.mubr.f32.gmra.mrb[0].mxu0 %v1053
    %v1121 = vpop.f32.mrb[0].mxu0
    %v1122 = vadd.f32 0.0, %v1121
    %v1123 = vpop.f32.mrb[0].mxu0
    %1124 = vdwg.mxu0
    %v1126 = vsel %vm540, %v533, 0
    %1128 = vmatprep.subr.mxu0 0.0
    %1129 = vmatpush1.msra.mxu0 %v149
    %1130 = vmatprep.subr.mxu0 0.0
    %1131 = vmatpush1.msra.mxu0 %v150
    %1132 = vmatprep.subr.mxu0 0.0
    %1133 = vmatpush1.msra.mxu0 %v151
    %1134 = vmatprep.subr.mxu0 0.0
    %1135 = vmatpush1.msra.mxu0 %v152
    %1136 = vmatprep.subr.mxu0 0.0
    %1137 = vmatpush1.msra.mxu0 0.0
    %1138 = vmatprep.subr.mxu0 0.0
    %1139 = vmatpush1.msra.mxu0 0.0
    %1140 = vmatprep.subr.mxu0 0.0
    %1141 = vmatpush1.msra.mxu0 0.0
    %1142 = vmatprep.subr.mxu0 0.0
    %1143 = vmatpush1.msra.mxu0 0.0
    %1144 = vmatprep.subr.mxu0 0.0
    %1145 = vmatpush1.msra.mxu0 0.0
    %1146 = vmatprep.subr.mxu0 0.0
    %1147 = vmatpush1.msra.mxu0 0.0
    %1148 = vmatprep.subr.mxu0 0.0
    %1149 = vmatpush1.msra.mxu0 0.0
    %1150 = vmatprep.subr.mxu0 0.0
    %1151 = vmatpush1.msra.mxu0 0.0
    %1152 = vmatprep.subr.mxu0 0.0
    %1153 = vmatpush1.msra.mxu0 0.0
    %1154 = vmatprep.subr.mxu0 0.0
    %1155 = vmatpush1.msra.mxu0 0.0
    %1156 = vmatprep.subr.mxu0 0.0
    %1157 = vmatpush1.msra.mxu0 0.0
    %1158 = vmatprep.subr.mxu0 0.0
    %1159 = vmatpush1.msra.mxu0 0.0
    %1160 = vmatprep.subr.mxu0 0.0
    %1161 = vmatpush1.msra.mxu0 0.0
    %1162 = vmatprep.subr.mxu0 0.0
    %1163 = vmatpush1.msra.mxu0 0.0
    %1164 = vmatprep.subr.mxu0 0.0
    %1165 = vmatpush1.msra.mxu0 0.0
    %1166 = vmatprep.subr.mxu0 0.0
    %1167 = vmatpush1.msra.mxu0 0.0
    %1168 = vmatprep.subr.mxu0 0.0
    %1169 = vmatpush1.msra.mxu0 0.0
    %1170 = vmatprep.subr.mxu0 0.0
    %1171 = vmatpush1.msra.mxu0 0.0
    %1172 = vmatprep.subr.mxu0 0.0
    %1173 = vmatpush1.msra.mxu0 0.0
    %1174 = vmatprep.subr.mxu0 0.0
    %1175 = vmatpush1.msra.mxu0 0.0
    %1176 = vmatprep.subr.mxu0 0.0
    %1177 = vmatpush1.msra.mxu0 0.0
    %1178 = vmatprep.subr.mxu0 0.0
    %1179 = vmatpush1.msra.mxu0 0.0
    %1180 = vmatprep.subr.mxu0 0.0
    %1181 = vmatpush1.msra.mxu0 0.0
    %1182 = vmatprep.subr.mxu0 0.0
    %1183 = vmatpush1.msra.mxu0 0.0
    %1184 = vmatprep.subr.mxu0 0.0
    %1185 = vmatpush1.msra.mxu0 0.0
    %1186 = vmatprep.subr.mxu0 0.0
    %1187 = vmatpush1.msra.mxu0 0.0
    %1188 = vmatprep.subr.mxu0 0.0
    %1189 = vmatpush1.msra.mxu0 0.0
    %1190 = vmatprep.subr.mxu0 0.0
    %1191 = vmatpush1.msra.mxu0 0.0
    %1192 = vmatprep.mubr.f32.mxu0 0.0
    %1193 = vmatmul.mubr.f32.gmra.mrb[0].mxu0 %v1126
    %v1194 = vpop.f32.mrb[0].mxu0
    %v1195 = vadd.f32 0.0, %v1194
    %v1196 = vpop.f32.mrb[0].mxu0
    %1197 = vdwg.mxu0
    %v1199 = vsel %vm540, %v539, 0
    %1201 = vmatprep.subr.mxu0 0.0
    %1202 = vmatpush1.msra.mxu0 %v149
    %1203 = vmatprep.subr.mxu0 0.0
    %1204 = vmatpush1.msra.mxu0 %v150
    %1205 = vmatprep.subr.mxu0 0.0
    %1206 = vmatpush1.msra.mxu0 %v151
    %1207 = vmatprep.subr.mxu0 0.0
    %1208 = vmatpush1.msra.mxu0 %v152
    %1209 = vmatprep.subr.mxu0 0.0
    %1210 = vmatpush1.msra.mxu0 0.0
    %1211 = vmatprep.subr.mxu0 0.0
    %1212 = vmatpush1.msra.mxu0 0.0
    %1213 = vmatprep.subr.mxu0 0.0
    %1214 = vmatpush1.msra.mxu0 0.0
    %1215 = vmatprep.subr.mxu0 0.0
    %1216 = vmatpush1.msra.mxu0 0.0
    %1217 = vmatprep.subr.mxu0 0.0
    %1218 = vmatpush1.msra.mxu0 0.0
    %1219 = vmatprep.subr.mxu0 0.0
    %1220 = vmatpush1.msra.mxu0 0.0
    %1221 = vmatprep.subr.mxu0 0.0
    %1222 = vmatpush1.msra.mxu0 0.0
    %1223 = vmatprep.subr.mxu0 0.0
    %1224 = vmatpush1.msra.mxu0 0.0
    %1225 = vmatprep.subr.mxu0 0.0
    %1226 = vmatpush1.msra.mxu0 0.0
    %1227 = vmatprep.subr.mxu0 0.0
    %1228 = vmatpush1.msra.mxu0 0.0
    %1229 = vmatprep.subr.mxu0 0.0
    %1230 = vmatpush1.msra.mxu0 0.0
    %1231 = vmatprep.subr.mxu0 0.0
    %1232 = vmatpush1.msra.mxu0 0.0
    %1233 = vmatprep.subr.mxu0 0.0
    %1234 = vmatpush1.msra.mxu0 0.0
    %1235 = vmatprep.subr.mxu0 0.0
    %1236 = vmatpush1.msra.mxu0 0.0
    %1237 = vmatprep.subr.mxu0 0.0
    %1238 = vmatpush1.msra.mxu0 0.0
    %1239 = vmatprep.subr.mxu0 0.0
    %1240 = vmatpush1.msra.mxu0 0.0
    %1241 = vmatprep.subr.mxu0 0.0
    %1242 = vmatpush1.msra.mxu0 0.0
    %1243 = vmatprep.subr.mxu0 0.0
    %1244 = vmatpush1.msra.mxu0 0.0
    %1245 = vmatprep.subr.mxu0 0.0
    %1246 = vmatpush1.msra.mxu0 0.0
    %1247 = vmatprep.subr.mxu0 0.0
    %1248 = vmatpush1.msra.mxu0 0.0
    %1249 = vmatprep.subr.mxu0 0.0
    %1250 = vmatpush1.msra.mxu0 0.0
    %1251 = vmatprep.subr.mxu0 0.0
    %1252 = vmatpush1.msra.mxu0 0.0
    %1253 = vmatprep.subr.mxu0 0.0
    %1254 = vmatpush1.msra.mxu0 0.0
    %1255 = vmatprep.subr.mxu0 0.0
    %1256 = vmatpush1.msra.mxu0 0.0
    %1257 = vmatprep.subr.mxu0 0.0
    %1258 = vmatpush1.msra.mxu0 0.0
    %1259 = vmatprep.subr.mxu0 0.0
    %1260 = vmatpush1.msra.mxu0 0.0
    %1261 = vmatprep.subr.mxu0 0.0
    %1262 = vmatpush1.msra.mxu0 0.0
    %1263 = vmatprep.subr.mxu0 0.0
    %1264 = vmatpush1.msra.mxu0 0.0
    %1265 = vmatprep.mubr.f32.mxu0 0.0
    %1266 = vmatmul.mubr.f32.gmra.mrb[0].mxu0 %v1199
    %v1267 = vpop.f32.mrb[0].mxu0
    %v1268 = vadd.f32 0.0, %v1267
    %v1269 = vpop.f32.mrb[0].mxu0
    %1270 = vdwg.mxu0
    %v1271 = vsub.f32 %v684, 1.0
    %v1272 = vsub.f32 %v757, 1.0
    %v1273 = vsub.f32 %v830, 1.0
    %v1274 = vsub.f32 %v903, 1.0
    %v1275 = vsub.f32 %v976, 1.0
    %v1276 = vsub.f32 %v1049, 1.0
    %v1277 = vsub.f32 %v1122, 1.0
    %v1278 = vsub.f32 %v1195, 1.0
    %v1279 = vsub.f32 %v1268, 1.0
    %v1280 = vmul.f32 %v156, 0.0
    %v1281 = vadd.f32 %v1280, %v611
    %vm1282 = vcmp.gt.f32.partialorder %v1281, 1.0
    %v1283 = vsel %vm1282, 1, 0
    %v1284 = vcvt.s32.f32 %v1283
    %v1285 = vadd.f32 %v1284, 0.0
    %v1286 = vmul.f32 %v156, %v1281
    %v1287 = vsel %vm1282, %v1271, %v684
    %v1288 = vadd.f32 %v1286, %v1287
    %vm1289 = vcmp.gt.f32.partialorder %v1288, 1.0
    %v1290 = vsel %vm1289, 1, 0
    %v1291 = vcvt.s32.f32 %v1290
    %v1292 = vadd.f32 %v1285, %v1291
    %v1293 = vmul.f32 %v156, %v1288
    %v1294 = vsel %vm1289, %v1272, %v757
    %v1295 = vadd.f32 %v1293, %v1294
    %vm1296 = vcmp.gt.f32.partialorder %v1295, 1.0
    %v1297 = vsel %vm1296, 1, 0
    %v1298 = vcvt.s32.f32 %v1297
    %v1299 = vadd.f32 %v1292, %v1298
    %v1300 = vmul.f32 %v156, %v1295
    %v1301 = vsel %vm1296, %v1273, %v830
    %v1302 = vadd.f32 %v1300, %v1301
    %vm1303 = vcmp.gt.f32.partialorder %v1302, 1.0
    %v1304 = vsel %vm1303, 1, 0
    %v1305 = vcvt.s32.f32 %v1304
    %v1306 = vadd.f32 %v1299, %v1305
    %v1307 = vmul.f32 %v156, %v1302
    %v1308 = vsel %vm1303, %v1274, %v903
    %v1309 = vadd.f32 %v1307, %v1308
    %vm1310 = vcmp.gt.f32.partialorder %v1309, 1.0
    %v1311 = vsel %vm1310, 1, 0
    %v1312 = vcvt.s32.f32 %v1311
    %v1313 = vadd.f32 %v1306, %v1312
    %v1314 = vmul.f32 %v156, %v1309
    %v1315 = vsel %vm1310, %v1275, %v976
    %v1316 = vadd.f32 %v1314, %v1315
    %vm1317 = vcmp.gt.f32.partialorder %v1316, 1.0
    %v1318 = vsel %vm1317, 1, 0
    %v1319 = vcvt.s32.f32 %v1318
    %v1320 = vadd.f32 %v1313, %v1319
    %v1321 = vmul.f32 %v156, %v1316
    %v1322 = vsel %vm1317, %v1276, %v1049
    %v1323 = vadd.f32 %v1321, %v1322
    %vm1324 = vcmp.gt.f32.partialorder %v1323, 1.0
    %v1325 = vsel %vm1324, 1, 0
    %v1326 = vcvt.s32.f32 %v1325
    %v1327 = vadd.f32 %v1320, %v1326
    %v1328 = vmul.f32 %v156, %v1323
    %v1329 = vsel %vm1324, %v1277, %v1122
    %v1330 = vadd.f32 %v1328, %v1329
    %vm1331 = vcmp.gt.f32.partialorder %v1330, 1.0
    %v1332 = vsel %vm1331, 1, 0
    %v1333 = vcvt.s32.f32 %v1332
    %v1334 = vadd.f32 %v1327, %v1333
    %v1335 = vmul.f32 %v156, %v1330
    %v1336 = vsel %vm1331, %v1278, %v1195
    %v1337 = vadd.f32 %v1335, %v1336
    %vm1338 = vcmp.gt.f32.partialorder %v1337, 1.0
    %v1339 = vsel %vm1338, 1, 0
    %v1340 = vcvt.s32.f32 %v1339
    %v1341 = vadd.f32 %v1334, %v1340
    %v1342 = vmul.f32 %v156, %v1337
    %v1343 = vsel %vm1338, %v1279, %v1268
    %v1344 = vadd.f32 %v1342, %v1343
    %vm1345 = vcmp.gt.f32.partialorder %v1344, 1.0
    %v1346 = vsel %vm1345, 1, 0
    %v1347 = vcvt.s32.f32 %v1346
    %v1348 = vadd.f32 %v1341, %v1347
    %v1349 = vmul.f32 %v1348, 0.1
    %vm1350 = vcmask 123904
    %1351 = vst.msk [vmem:[#allocation3] sm:$0x3] %vm1350, %v1349
    // Predicated region
    $region18: #{normal_snn_forward.1} parent=1 // pred_check
      _
    $region19: #{normal_snn_forward.1} parent=1 // pred_check_branch
      %1353 = sbr.rel (0) target = $region21
    $region20: #{normal_snn_forward.1} parent=1 // pred_region
      %s1355 = ssub.s32 32, 32
      %1356 = vsyncadd [#allocation4], %s1355
      %s1358 = sshll.u32 [#allocation3], 4
      %s1359 = int_to_ptr.vmem [resolvable:$true] %s1358
      %1361 = dma.vmem_to_hbm [thread:$0]  %s1359, 32, %s4, [#allocation4]
    $region21: #{normal_snn_forward.1} parent=1 // pred_fallthru
      _
    // Predicated region
    $region22: #{normal_snn_forward.1} parent=1 // pred_check
      _
    $region23: #{normal_snn_forward.1} parent=1 // pred_check_branch
      %1363 = sbr.rel (0) target = $region25
    $region24: #{normal_snn_forward.1} parent=1 // pred_region
      %1364 = dma.done [#allocation4], 32
    $region25: #{normal_snn_forward.1} parent=1 // pred_fallthru
      _
    %1365 = vsyncpa [#allocation4], 1

</llo_original>
